<compile_context>
chip_gen: v7x
topology: tpu7x:2x2x1
jax: 0.10.0
libtpu: 0.0.40
codegen_flags: <defaults>
</compile_context>

<pallas_src>
import functools

import jax
import jax.numpy as jnp
from jax.experimental import pallas as pl
from jax.experimental.pallas import tpu as pltpu

HIDDEN = 512
LANE = 128  # fused layer-3 output padded to one full lane group


def _dqn_kernel(x_ref, w1_ref, w2_ref, w3_ref, b_ref, out_ref, *, actions_n):
    # All biases in one fp32 blob: row 0 = [bv1|ba1], row 1 = [bv2|ba2],
    # row 2 = [bv3, ba3..., 0...].
    b = b_ref[...]                                  # (3, 1024) f32
    b1 = b[0:1, :]                                  # (1, 1024)
    b2v = b[1:2, 0:HIDDEN]                          # (1, 512)
    b2a = b[1:2, HIDDEN:2 * HIDDEN]                 # (1, 512)
    b3 = b[2:3, 0:LANE]                             # (1, 128)

    x = x_ref[...].astype(jnp.bfloat16)

    # ---- layer 1: both branches in one matmul  (tb, obs) @ (obs, 1024) ----
    h1 = jnp.dot(x, w1_ref[...], preferred_element_type=jnp.float32) + b1
    h1 = jnp.maximum(h1, 0.0)                       # f32 ReLU
    hv = h1[:, 0:HIDDEN].astype(jnp.bfloat16)
    ha = h1[:, HIDDEN:2 * HIDDEN].astype(jnp.bfloat16)

    # ---- layer 2: per-branch (weights stacked in one (1024, 512) blob) ----
    hv2 = jnp.dot(hv, w2_ref[0:HIDDEN, :],
                  preferred_element_type=jnp.float32) + b2v
    hv2 = jnp.maximum(hv2, 0.0).astype(jnp.bfloat16)
    ha2 = jnp.dot(ha, w2_ref[HIDDEN:2 * HIDDEN, :],
                  preferred_element_type=jnp.float32) + b2a
    ha2 = jnp.maximum(ha2, 0.0).astype(jnp.bfloat16)

    # ---- layer 3: fused block-diagonal (1024, 128) weight, lane-dense ----
    # col 0 = value head, cols 1..A = advantage head, rest zero.
    o3 = (jnp.dot(hv2, w3_ref[0:HIDDEN, :], preferred_element_type=jnp.float32)
          + jnp.dot(ha2, w3_ref[HIDDEN:2 * HIDDEN, :],
                    preferred_element_type=jnp.float32)
          + b3)                                     # (tb, 128) f32

    val = o3[:, 0:1]                                # (tb, 1)
    adv = o3[:, 1:1 + actions_n]                    # (tb, A)
    adv_mean = jnp.sum(adv, axis=1, keepdims=True) * (1.0 / actions_n)
    out_ref[...] = (val + adv - adv_mean).astype(out_ref.dtype)


def simple_ff_dqn(x, packed):
    """x: (B, obs_len) f32; packed: dict from pack_params()."""
    B, obs_len = x.shape
    actions_n = packed["actions_n"]
    w1, w2, w3, b = packed["w1"], packed["w2"], packed["w3"], packed["b"]

    # Batch tile: weights stay VMEM-resident across the (parallel) batch grid.
    # tile_b <= 256 keeps double-buffered activations tiny even on v7x (64 MiB).
    tile_b = B if B <= 256 else 256
    grid = (pl.cdiv(B, tile_b),)

    kernel = functools.partial(_dqn_kernel, actions_n=actions_n)
    return pl.pallas_call(
        kernel,
        out_shape=jax.ShapeDtypeStruct((B, actions_n), jnp.float32),
        grid=grid,
        in_specs=[
            pl.BlockSpec((tile_b, obs_len), lambda i: (i, 0)),        # x (tiled)
            pl.BlockSpec((obs_len, 2 * HIDDEN), lambda i: (0, 0)),    # w1 resident
            pl.BlockSpec((2 * HIDDEN, HIDDEN), lambda i: (0, 0)),     # w2 resident
            pl.BlockSpec((2 * HIDDEN, LANE), lambda i: (0, 0)),       # w3 resident
            pl.BlockSpec((3, 2 * HIDDEN), lambda i: (0, 0)),          # biases
        ],
        out_specs=pl.BlockSpec((tile_b, actions_n), lambda i: (i, 0)),
        compiler_params=pltpu.CompilerParams(
            dimension_semantics=("parallel",)),
    )(x, w1, w2, w3, b)


def init_params(key, obs_len, actions_n):
    """fp32 params mimicking nn.Linear's U(-1/sqrt(fan_in), 1/sqrt(fan_in)).
    Weights stored transposed: (in_features, out_features); biases 1-D."""
    def linear(k, fan_in, fan_out):
        kw, kb = jax.random.split(k)
        bound = 1.0 / (fan_in ** 0.5)
        w = jax.random.uniform(kw, (fan_in, fan_out), jnp.float32, -bound, bound)
        b = jax.random.uniform(kb, (fan_out,), jnp.float32, -bound, bound)
        return w, b

    ks = jax.random.split(key, 6)
    p = {}
    p["wv1"], p["bv1"] = linear(ks[0], obs_len, HIDDEN)
    p["wv2"], p["bv2"] = linear(ks[1], HIDDEN, HIDDEN)
    p["wv3"], p["bv3"] = linear(ks[2], HIDDEN, 1)
    p["wa1"], p["ba1"] = linear(ks[3], obs_len, HIDDEN)
    p["wa2"], p["ba2"] = linear(ks[4], HIDDEN, HIDDEN)
    p["wa3"], p["ba3"] = linear(ks[5], HIDDEN, actions_n)
    return p


def pack_params(p, actions_n):
    """Pack the 12 per-layer tensors into 3 bf16 weight blobs + 1 fp32 bias blob."""
    w1 = jnp.concatenate([p["wv1"], p["wa1"]], axis=1).astype(jnp.bfloat16)  # (obs, 1024)
    w2 = jnp.concatenate([p["wv2"], p["wa2"]], axis=0).astype(jnp.bfloat16)  # (1024, 512)

    w3 = jnp.zeros((2 * HIDDEN, LANE), jnp.float32)                          # (1024, 128)
    w3 = w3.at[0:HIDDEN, 0:1].set(p["wv3"])
    w3 = w3.at[HIDDEN:2 * HIDDEN, 1:1 + actions_n].set(p["wa3"])
    w3 = w3.astype(jnp.bfloat16)

    b = jnp.zeros((3, 2 * HIDDEN), jnp.float32)                              # (3, 1024)
    b = b.at[0, :].set(jnp.concatenate([p["bv1"], p["ba1"]]))
    b = b.at[1, :].set(jnp.concatenate([p["bv2"], p["ba2"]]))
    b = b.at[2, 0].set(p["bv3"][0])
    b = b.at[2, 1:1 + actions_n].set(p["ba3"])
    return {"w1": w1, "w2": w2, "w3": w3, "b": b, "actions_n": actions_n}


def reference_forward(x, p):
    """Pure-JAX fp32 reference of the PyTorch forward (unpacked params)."""
    def mlp(x, w1, b1, w2, b2, w3, b3):
        h = jnp.maximum(x @ w1 + b1, 0.0)
        h = jnp.maximum(h @ w2 + b2, 0.0)
        return h @ w3 + b3
    val = mlp(x, p["wv1"], p["bv1"], p["wv2"], p["bv2"], p["wv3"], p["bv3"])
    adv = mlp(x, p["wa1"], p["ba1"], p["wa2"], p["ba2"], p["wa3"], p["ba3"])
    return val + adv - adv.mean(axis=1, keepdims=True)


if __name__ == "__main__":
    B, OBS_LEN, ACTIONS_N = 8, 32, 4

    key = jax.random.PRNGKey(0)
    kx, kp = jax.random.split(key)
    x = jax.random.normal(kx, (B, OBS_LEN), jnp.float32)
    params = init_params(kp, OBS_LEN, ACTIONS_N)
    packed = pack_params(params, ACTIONS_N)

    out = jax.block_until_ready(simple_ff_dqn(x, packed))

    # Reference uses the same bf16-rounded weights (fp32 math) so only the
    # in-kernel bf16 activation casts differ -> tight-but-safe tolerance.
    p_bf = {k: (v.astype(jnp.bfloat16).astype(jnp.float32) if k.startswith("w") else v)
            for k, v in params.items()}
    ref = reference_forward(x, p_bf)

    assert out.shape == (B, ACTIONS_N)
    max_err = float(jnp.max(jnp.abs(out - ref)))
    assert jnp.allclose(out, ref, atol=2e-2, rtol=2e-2), f"mismatch vs reference (max abs err {max_err})"

    print("KERNEL_OK")
</pallas_src>

<mosaic_0001>
module attributes {stable_mosaic.version = 11 : i64} {
  func.func @_dqn_kernel(%arg0: i32, %arg1: memref<8x32xf32, #tpu.memory_space<vmem>>, %arg2: memref<32x1024xbf16, #tpu.memory_space<vmem>>, %arg3: memref<1024x512xbf16, #tpu.memory_space<vmem>>, %arg4: memref<1024x128xbf16, #tpu.memory_space<vmem>>, %arg5: memref<3x1024xf32, #tpu.memory_space<vmem>>, %arg6: memref<8x4xf32, #tpu.memory_space<vmem>>) attributes {dimension_semantics = [#tpu.dimension_semantics<parallel>], iteration_bounds = array<i64: 1>, scalar_prefetch = 0 : i64, scratch_operands = 0 : i64, tpu.core_type = #tpu.core_type<tc>, window_params = [{transform_indices = @transform_0, window_bounds = array<i64: 8, 32>}, {pipeline_mode = #tpu.pipeline_mode<synchronous>, transform_indices = @transform_1, window_bounds = array<i64: 32, 1024>}, {pipeline_mode = #tpu.pipeline_mode<synchronous>, transform_indices = @transform_2, window_bounds = array<i64: 1024, 512>}, {pipeline_mode = #tpu.pipeline_mode<synchronous>, transform_indices = @transform_3, window_bounds = array<i64: 1024, 128>}, {pipeline_mode = #tpu.pipeline_mode<synchronous>, transform_indices = @transform_4, window_bounds = array<i64: 3, 1024>}, {transform_indices = @transform_5, window_bounds = array<i64: 8, 4>}]} {
    %c0 = arith.constant 0 : index
    %c0_0 = arith.constant 0 : index
    %0 = vector.load %arg5[%c0, %c0_0] : memref<3x1024xf32, #tpu.memory_space<vmem>>, vector<3x1024xf32>
    %1 = vector.extract_strided_slice %0 {offsets = [0, 0], sizes = [1, 1024], strides = [1, 1]} : vector<3x1024xf32> to vector<1x1024xf32>
    %2 = vector.extract_strided_slice %0 {offsets = [1, 0], sizes = [1, 512], strides = [1, 1]} : vector<3x1024xf32> to vector<1x512xf32>
    %3 = vector.extract_strided_slice %0 {offsets = [1, 512], sizes = [1, 512], strides = [1, 1]} : vector<3x1024xf32> to vector<1x512xf32>
    %4 = vector.extract_strided_slice %0 {offsets = [2, 0], sizes = [1, 128], strides = [1, 1]} : vector<3x1024xf32> to vector<1x128xf32>
    %c0_1 = arith.constant 0 : index
    %c0_2 = arith.constant 0 : index
    %5 = vector.load %arg1[%c0_1, %c0_2] : memref<8x32xf32, #tpu.memory_space<vmem>>, vector<8x32xf32>
    %6 = arith.truncf %5 : vector<8x32xf32> to vector<8x32xbf16>
    %c0_3 = arith.constant 0 : index
    %c0_4 = arith.constant 0 : index
    %7 = vector.load %arg2[%c0_3, %c0_4] : memref<32x1024xbf16, #tpu.memory_space<vmem>>, vector<32x1024xbf16>
    %cst = arith.constant dense<0.000000e+00> : vector<8x1024xf32>
    %8 = tpu.matmul %6, %7, %cst {dimension_numbers = #tpu.dot_dimension_numbers<[1], [0], [0], [1], [0, 0, 1, 1], [], []>} : vector<8x32xbf16>, vector<32x1024xbf16>, vector<8x1024xf32> -> vector<8x1024xf32>
    %9 = vector.broadcast %1 : vector<1x1024xf32> to vector<8x1024xf32>
    %10 = arith.addf %8, %9 : vector<8x1024xf32>
    %cst_5 = arith.constant 0.000000e+00 : f32
    %11 = vector.broadcast %cst_5 : f32 to vector<8x1024xf32>
    %12 = arith.maximumf %10, %11 : vector<8x1024xf32>
    %13 = vector.extract_strided_slice %12 {offsets = [0, 0], sizes = [8, 512], strides = [1, 1]} : vector<8x1024xf32> to vector<8x512xf32>
    %14 = arith.truncf %13 : vector<8x512xf32> to vector<8x512xbf16>
    %15 = vector.extract_strided_slice %12 {offsets = [0, 512], sizes = [8, 512], strides = [1, 1]} : vector<8x1024xf32> to vector<8x512xf32>
    %16 = arith.truncf %15 : vector<8x512xf32> to vector<8x512xbf16>
    %c0_6 = arith.constant 0 : index
    %c0_7 = arith.constant 0 : index
    %17 = vector.load %arg3[%c0_6, %c0_7] : memref<1024x512xbf16, #tpu.memory_space<vmem>>, vector<512x512xbf16>
    %cst_8 = arith.constant dense<0.000000e+00> : vector<8x512xf32>
    %18 = tpu.matmul %14, %17, %cst_8 {dimension_numbers = #tpu.dot_dimension_numbers<[1], [0], [0], [1], [0, 0, 1, 1], [], []>} : vector<8x512xbf16>, vector<512x512xbf16>, vector<8x512xf32> -> vector<8x512xf32>
    %19 = vector.broadcast %2 : vector<1x512xf32> to vector<8x512xf32>
    %20 = arith.addf %18, %19 : vector<8x512xf32>
    %cst_9 = arith.constant 0.000000e+00 : f32
    %21 = vector.broadcast %cst_9 : f32 to vector<8x512xf32>
    %22 = arith.maximumf %20, %21 : vector<8x512xf32>
    %23 = arith.truncf %22 : vector<8x512xf32> to vector<8x512xbf16>
    %c512 = arith.constant 512 : index
    %c0_10 = arith.constant 0 : index
    %24 = vector.load %arg3[%c512, %c0_10] : memref<1024x512xbf16, #tpu.memory_space<vmem>>, vector<512x512xbf16>
    %cst_11 = arith.constant dense<0.000000e+00> : vector<8x512xf32>
    %25 = tpu.matmul %16, %24, %cst_11 {dimension_numbers = #tpu.dot_dimension_numbers<[1], [0], [0], [1], [0, 0, 1, 1], [], []>} : vector<8x512xbf16>, vector<512x512xbf16>, vector<8x512xf32> -> vector<8x512xf32>
    %26 = vector.broadcast %3 : vector<1x512xf32> to vector<8x512xf32>
    %27 = arith.addf %25, %26 : vector<8x512xf32>
    %cst_12 = arith.constant 0.000000e+00 : f32
    %28 = vector.broadcast %cst_12 : f32 to vector<8x512xf32>
    %29 = arith.maximumf %27, %28 : vector<8x512xf32>
    %30 = arith.truncf %29 : vector<8x512xf32> to vector<8x512xbf16>
    %c0_13 = arith.constant 0 : index
    %c0_14 = arith.constant 0 : index
    %31 = vector.load %arg4[%c0_13, %c0_14] : memref<1024x128xbf16, #tpu.memory_space<vmem>>, vector<512x128xbf16>
    %cst_15 = arith.constant dense<0.000000e+00> : vector<8x128xf32>
    %32 = tpu.matmul %23, %31, %cst_15 {dimension_numbers = #tpu.dot_dimension_numbers<[1], [0], [0], [1], [0, 0, 1, 1], [], []>} : vector<8x512xbf16>, vector<512x128xbf16>, vector<8x128xf32> -> vector<8x128xf32>
    %c512_16 = arith.constant 512 : index
    %c0_17 = arith.constant 0 : index
    %33 = vector.load %arg4[%c512_16, %c0_17] : memref<1024x128xbf16, #tpu.memory_space<vmem>>, vector<512x128xbf16>
    %cst_18 = arith.constant dense<0.000000e+00> : vector<8x128xf32>
    %34 = tpu.matmul %30, %33, %cst_18 {dimension_numbers = #tpu.dot_dimension_numbers<[1], [0], [0], [1], [0, 0, 1, 1], [], []>} : vector<8x512xbf16>, vector<512x128xbf16>, vector<8x128xf32> -> vector<8x128xf32>
    %35 = arith.addf %32, %34 : vector<8x128xf32>
    %36 = vector.broadcast %4 : vector<1x128xf32> to vector<8x128xf32>
    %37 = arith.addf %35, %36 : vector<8x128xf32>
    %38 = vector.extract_strided_slice %37 {offsets = [0, 0], sizes = [8, 1], strides = [1, 1]} : vector<8x128xf32> to vector<8x1xf32>
    %39 = vector.extract_strided_slice %37 {offsets = [0, 1], sizes = [8, 4], strides = [1, 1]} : vector<8x128xf32> to vector<8x4xf32>
    %cst_19 = arith.constant dense<0.000000e+00> : vector<8xf32>
    %40 = vector.multi_reduction <add>, %39, %cst_19 [1] : vector<8x4xf32> to vector<8xf32>
    %41 = vector.shape_cast %40 : vector<8xf32> to vector<8x1xf32>
    %cst_20 = arith.constant 2.500000e-01 : f32
    %42 = vector.broadcast %cst_20 : f32 to vector<8x1xf32>
    %43 = arith.mulf %41, %42 : vector<8x1xf32>
    %44 = vector.broadcast %38 : vector<8x1xf32> to vector<8x4xf32>
    %45 = arith.addf %44, %39 : vector<8x4xf32>
    %46 = vector.broadcast %43 : vector<8x1xf32> to vector<8x4xf32>
    %47 = arith.subf %45, %46 : vector<8x4xf32>
    %c0_21 = arith.constant 0 : index
    %c0_22 = arith.constant 0 : index
    %48 = vector.load %arg6[%c0_21, %c0_22] : memref<8x4xf32, #tpu.memory_space<vmem>>, vector<8x4xf32>
    tpu.vector_store %arg6[%c0_21, %c0_22], %47 {strides = array<i32>} : memref<8x4xf32, #tpu.memory_space<vmem>>, vector<8x4xf32>,
    return
  }
  func.func @transform_0(%arg0: i32) -> (i32, i32) {
    %c0_i32 = arith.constant 0 : i32
    %c0_i32_0 = arith.constant 0 : i32
    return %arg0, %c0_i32 : i32, i32
  }
  func.func @transform_1(%arg0: i32) -> (i32, i32) {
    %c0_i32 = arith.constant 0 : i32
    %c0_i32_0 = arith.constant 0 : i32
    %c0_i32_1 = arith.constant 0 : i32
    return %c0_i32, %c0_i32_0 : i32, i32
  }
  func.func @transform_2(%arg0: i32) -> (i32, i32) {
    %c0_i32 = arith.constant 0 : i32
    %c0_i32_0 = arith.constant 0 : i32
    %c0_i32_1 = arith.constant 0 : i32
    return %c0_i32, %c0_i32_0 : i32, i32
  }
  func.func @transform_3(%arg0: i32) -> (i32, i32) {
    %c0_i32 = arith.constant 0 : i32
    %c0_i32_0 = arith.constant 0 : i32
    %c0_i32_1 = arith.constant 0 : i32
    return %c0_i32, %c0_i32_0 : i32, i32
  }
  func.func @transform_4(%arg0: i32) -> (i32, i32) {
    %c0_i32 = arith.constant 0 : i32
    %c0_i32_0 = arith.constant 0 : i32
    %c0_i32_1 = arith.constant 0 : i32
    return %c0_i32, %c0_i32_0 : i32, i32
  }
  func.func @transform_5(%arg0: i32) -> (i32, i32) {
    %c0_i32 = arith.constant 0 : i32
    %c0_i32_0 = arith.constant 0 : i32
    return %arg0, %c0_i32 : i32, i32
  }
}

</mosaic_0001>

<llo_original>
// kernel: tpu_custom_call.1
$region0: #{tpu_custom_call.1}
  #allocation0 [shape = 'u32[]', space=smem, size = 0x4, offset = 0x4, fixed_abs, tag = 'smem constant byte address 0x4 - core index']
  #allocation1 [shape = 'u32[144,128]{1,0:T(1,128)}', space=vmem, size = 0x12000, scoped, tag = 'internal scratch']
  %s0 = inlined_call_operand.hbm [shape: f32[8,32], index: 0, kind: input, shape index: {}]
  %s1 = inlined_call_operand.hbm [shape: bf16[32,1024], index: 1, kind: input, shape index: {}]
  %s2 = inlined_call_operand.hbm [shape: bf16[1024,512], index: 2, kind: input, shape index: {}]
  %s3 = inlined_call_operand.hbm [shape: bf16[1024,128], index: 3, kind: input, shape index: {}]
  %s4 = inlined_call_operand.hbm [shape: f32[3,1024], index: 4, kind: input, shape index: {}]
  %s5 = inlined_call_operand.vmem [shape: f32[8,4], index: 5, kind: output, shape index: {}]
  %s6 = sld [smem:[#allocation0]]
  $region50: #{tpu_custom_call.1} parent=0
    _
  %s8 = ssub.s32 1, %s6
  %s9 = scalar_select 0, %s8, %s6
  $region1: #{tpu_custom_call.1} parent=0
    #allocation2 [shape = 'u8[4096]{0}', space=vmem, size = 0x1000, scoped, tag = 'input window, operand 0, single buffered']
    #allocation3 [shape = 's32[1]{0}', space=sflag, size = 0x4, scoped, tag = 'scoped memory for tpu_custom_call.1']
    #allocation4 [shape = 'u8[65536]{0}', space=vmem, size = 0x10000, scoped, tag = 'input window, operand 1, single buffered']
    #allocation5 [shape = 's32[1]{0}', space=sflag, size = 0x4, scoped, tag = 'scoped memory for tpu_custom_call.1']
    #allocation6 [shape = 'u8[1048576]{0}', space=vmem, size = 0x100000, scoped, tag = 'input window, operand 2, single buffered']
    #allocation7 [shape = 'u8[262144]{0}', space=vmem, size = 0x40000, scoped, tag = 'input window, operand 3, single buffered']
    #allocation8 [shape = 's32[1]{0}', space=sflag, size = 0x4, scoped, tag = 'scoped memory for tpu_custom_call.1']
    #allocation9 [shape = 'u8[16384]{0}', space=vmem, size = 0x4000, scoped, tag = 'input window, operand 4, single buffered']
    %10 = vsyncpa [#allocation3], 0
    %11 = vsyncpa [#allocation5], 0
    %12 = vsyncpa [#allocation8], 0
    // Predicated region
    $region2: #{tpu_custom_call.1} parent=1 // pred_check
      _
    $region3: #{tpu_custom_call.1} parent=1 // pred_check_branch
      %14 = sbr.rel (0) target = $region5
    $region4: #{tpu_custom_call.1} parent=1 // pred_region
      %s16 = ssub.s32 128, 128
      %17 = vsyncadd [#allocation3], %s16
      %s19 = sshll.u32 [#allocation2], 4
      %s20 = int_to_ptr.vmem [resolvable:$true] %s19
      %22 = dma.hbm_to_vmem [thread:$0]  %s0, 128, %s20, [#allocation3]
    $region5: #{tpu_custom_call.1} parent=1 // pred_fallthru
      _
    // Predicated region
    $region6: #{tpu_custom_call.1} parent=1 // pred_check
      _
    $region7: #{tpu_custom_call.1} parent=1 // pred_check_branch
      %24 = sbr.rel (0) target = $region9
    $region8: #{tpu_custom_call.1} parent=1 // pred_region
      %s26 = ssub.s32 2048, 2048
      %27 = vsyncadd [#allocation5], %s26
      %s28 = sshll.u32 [#allocation4], 4
      %s29 = int_to_ptr.vmem [resolvable:$true] %s28
      %34 = dma.hbm_to_vmem [thread:$0]  %s1, 2048, %s29, [#allocation5], 512, 512, 32
    $region9: #{tpu_custom_call.1} parent=1 // pred_fallthru
      _
    // Predicated region
    $region10: #{tpu_custom_call.1} parent=1 // pred_check
      _
    $region11: #{tpu_custom_call.1} parent=1 // pred_check_branch
      %36 = sbr.rel (0) target = $region13
    $region12: #{tpu_custom_call.1} parent=1 // pred_region
      %s38 = ssub.s32 32768, 32768
      %39 = vsyncadd [#allocation5], %s38
      %s40 = sshll.u32 [#allocation6], 4
      %s41 = int_to_ptr.vmem [resolvable:$true] %s40
      %46 = dma.hbm_to_vmem [thread:$0]  %s2, 32768, %s41, [#allocation5], 256, 256, 16
    $region13: #{tpu_custom_call.1} parent=1 // pred_fallthru
      _
    // Predicated region
    $region14: #{tpu_custom_call.1} parent=1 // pred_check
      _
    $region15: #{tpu_custom_call.1} parent=1 // pred_check_branch
      %48 = sbr.rel (0) target = $region17
    $region16: #{tpu_custom_call.1} parent=1 // pred_region
      %s50 = ssub.s32 8192, 8192
      %51 = vsyncadd [#allocation8], %s50
      %s52 = sshll.u32 [#allocation7], 4
      %s53 = int_to_ptr.vmem [resolvable:$true] %s52
      %58 = dma.hbm_to_vmem [thread:$0]  %s3, 8192, %s53, [#allocation8], 64, 64, 4
    $region17: #{tpu_custom_call.1} parent=1 // pred_fallthru
      _
    // Predicated region
    $region18: #{tpu_custom_call.1} parent=1 // pred_check
      _
    $region19: #{tpu_custom_call.1} parent=1 // pred_check_branch
      %60 = sbr.rel (0) target = $region21
    $region20: #{tpu_custom_call.1} parent=1 // pred_region
      %s62 = ssub.s32 512, 512
      %63 = vsyncadd [#allocation8], %s62
      %s65 = sshll.u32 [#allocation9], 4
      %s66 = int_to_ptr.vmem [resolvable:$true] %s65
      %68 = dma.hbm_to_vmem [thread:$0]  %s4, 512, %s66, [#allocation8]
    $region21: #{tpu_custom_call.1} parent=1 // pred_fallthru
      _
    // Predicated region
    $region22: #{tpu_custom_call.1} parent=1 // pred_check
      _
    $region23: #{tpu_custom_call.1} parent=1 // pred_check_branch
      %70 = sbr.rel (0) target = $region25
    $region24: #{tpu_custom_call.1} parent=1 // pred_region
      %71 = dma.done [#allocation3], 128
    $region25: #{tpu_custom_call.1} parent=1 // pred_fallthru
      _
    // Predicated region
    $region26: #{tpu_custom_call.1} parent=1 // pred_check
      _
    $region27: #{tpu_custom_call.1} parent=1 // pred_check_branch
      %73 = sbr.rel (0) target = $region29
    $region28: #{tpu_custom_call.1} parent=1 // pred_region
      %74 = dma.done [#allocation5], 2048
    $region29: #{tpu_custom_call.1} parent=1 // pred_fallthru
      _
    // Predicated region
    $region30: #{tpu_custom_call.1} parent=1 // pred_check
      _
    $region31: #{tpu_custom_call.1} parent=1 // pred_check_branch
      %76 = sbr.rel (0) target = $region33
    $region32: #{tpu_custom_call.1} parent=1 // pred_region
      %77 = dma.done [#allocation5], 32768
    $region33: #{tpu_custom_call.1} parent=1 // pred_fallthru
      _
    // Predicated region
    $region34: #{tpu_custom_call.1} parent=1 // pred_check
      _
    $region35: #{tpu_custom_call.1} parent=1 // pred_check_branch
      %79 = sbr.rel (0) target = $region37
    $region36: #{tpu_custom_call.1} parent=1 // pred_region
      %80 = dma.done [#allocation8], 8192
    $region37: #{tpu_custom_call.1} parent=1 // pred_fallthru
      _
    // Predicated region
    $region38: #{tpu_custom_call.1} parent=1 // pred_check
      _
    $region39: #{tpu_custom_call.1} parent=1 // pred_check_branch
      %82 = sbr.rel (0) target = $region41
    $region40: #{tpu_custom_call.1} parent=1 // pred_region
      %83 = dma.done [#allocation8], 512
    $region41: #{tpu_custom_call.1} parent=1 // pred_fallthru
      _
    %v85 = vld [vmem:[#allocation9] sm:$0x77]
    %v86 = vld [vmem:[#allocation9 + $0x8] sm:$0x77]
    %v87 = vld [vmem:[#allocation9 + $0x10] sm:$0x77]
    %v88 = vld [vmem:[#allocation9 + $0x18] sm:$0x77]
    %v89 = vld [vmem:[#allocation2] sm:$0xff]
    %v90 = vpack.c.bf16 %v89, %v89
    %v91 = vld [vmem:[#allocation4] sm:$0xff]
    %v92 = vld [vmem:[#allocation4 + $0x8] sm:$0xff]
    %v93 = vld [vmem:[#allocation4 + $0x10] sm:$0xff]
    %v94 = vld [vmem:[#allocation4 + $0x18] sm:$0xff]
    %v95 = vld [vmem:[#allocation4 + $0x20] sm:$0xff]
    %v96 = vld [vmem:[#allocation4 + $0x28] sm:$0xff]
    %v97 = vld [vmem:[#allocation4 + $0x30] sm:$0xff]
    %v98 = vld [vmem:[#allocation4 + $0x38] sm:$0xff]
    %v99 = vld [vmem:[#allocation4 + $0x40] sm:$0xff]
    %v100 = vld [vmem:[#allocation4 + $0x48] sm:$0xff]
    %v101 = vld [vmem:[#allocation4 + $0x50] sm:$0xff]
    %v102 = vld [vmem:[#allocation4 + $0x58] sm:$0xff]
    %v103 = vld [vmem:[#allocation4 + $0x60] sm:$0xff]
    %v104 = vld [vmem:[#allocation4 + $0x68] sm:$0xff]
    %v105 = vld [vmem:[#allocation4 + $0x70] sm:$0xff]
    %v106 = vld [vmem:[#allocation4 + $0x78] sm:$0xff]
    %v111 = vlaneseq
    %v112 = vshrl.u32 %v111, 7
    %v113 = vsub.s32 0, %v112
    %v114 = vrot.slane %v85, %v113
    %v115 = vlaneseq
    %v116 = vshrl.u32 %v115, 7
    %v117 = vsub.s32 4, %v116
    %v118 = vrot.slane %v85, %v117
    %v119 = vlaneseq
    %v120 = vshrl.u32 %v119, 7
    %v121 = vsub.s32 0, %v120
    %v122 = vrot.slane %v86, %v121
    %v123 = vlaneseq
    %v124 = vshrl.u32 %v123, 7
    %v125 = vsub.s32 4, %v124
    %v126 = vrot.slane %v86, %v125
    %v127 = vlaneseq
    %v128 = vshrl.u32 %v127, 7
    %v129 = vsub.s32 0, %v128
    %v130 = vrot.slane %v87, %v129
    %v131 = vlaneseq
    %v132 = vshrl.u32 %v131, 7
    %v133 = vsub.s32 4, %v132
    %v134 = vrot.slane %v87, %v133
    %v135 = vlaneseq
    %v136 = vshrl.u32 %v135, 7
    %v137 = vsub.s32 0, %v136
    %v138 = vrot.slane %v88, %v137
    %v139 = vlaneseq
    %v140 = vshrl.u32 %v139, 7
    %v141 = vsub.s32 4, %v140
    %v142 = vrot.slane %v88, %v141
    %v151 = vlaneseq
    %v152 = vshrl.u32 %v151, 7
    %v153 = vsub.s32 0, %v152
    %v154 = vrot.slane %v114, %v153
    %v155 = vlaneseq
    %v156 = vshrl.u32 %v155, 7
    %v157 = vsub.s32 0, %v156
    %v158 = vrot.slane %v118, %v157
    %v159 = vlaneseq
    %v160 = vshrl.u32 %v159, 7
    %v161 = vsub.s32 0, %v160
    %v162 = vrot.slane %v122, %v161
    %v163 = vlaneseq
    %v164 = vshrl.u32 %v163, 7
    %v165 = vsub.s32 0, %v164
    %v166 = vrot.slane %v126, %v165
    %v167 = vlaneseq
    %v168 = vshrl.u32 %v167, 7
    %v169 = vsub.s32 0, %v168
    %v170 = vrot.slane %v130, %v169
    %v171 = vlaneseq
    %v172 = vshrl.u32 %v171, 7
    %v173 = vsub.s32 0, %v172
    %v174 = vrot.slane %v134, %v173
    %v175 = vlaneseq
    %v176 = vshrl.u32 %v175, 7
    %v177 = vsub.s32 0, %v176
    %v178 = vrot.slane %v138, %v177
    %v179 = vlaneseq
    %v180 = vshrl.u32 %v179, 7
    %v181 = vsub.s32 0, %v180
    %v182 = vrot.slane %v142, %v181
    %v199 = vunpack.c.l.b16 %v91
    %v200 = vunpack.c.h.b16 %v91
    %v201 = vunpack.c.l.b16 %v92
    %v202 = vunpack.c.h.b16 %v92
    %v203 = vunpack.c.l.b16 %v93
    %v204 = vunpack.c.h.b16 %v93
    %v205 = vunpack.c.l.b16 %v94
    %v206 = vunpack.c.h.b16 %v94
    %v207 = vunpack.c.l.b16 %v95
    %v208 = vunpack.c.h.b16 %v95
    %v209 = vunpack.c.l.b16 %v96
    %v210 = vunpack.c.h.b16 %v96
    %v211 = vunpack.c.l.b16 %v97
    %v212 = vunpack.c.h.b16 %v97
    %v213 = vunpack.c.l.b16 %v98
    %v214 = vunpack.c.h.b16 %v98
    %v215 = vunpack.c.l.b16 %v99
    %v216 = vunpack.c.h.b16 %v99
    %v217 = vunpack.c.l.b16 %v100
    %v218 = vunpack.c.h.b16 %v100
    %v219 = vunpack.c.l.b16 %v101
    %v220 = vunpack.c.h.b16 %v101
    %v221 = vunpack.c.l.b16 %v102
    %v222 = vunpack.c.h.b16 %v102
    %v223 = vunpack.c.l.b16 %v103
    %v224 = vunpack.c.h.b16 %v103
    %v225 = vunpack.c.l.b16 %v104
    %v226 = vunpack.c.h.b16 %v104
    %v227 = vunpack.c.l.b16 %v105
    %v228 = vunpack.c.h.b16 %v105
    %v229 = vunpack.c.l.b16 %v106
    %v230 = vunpack.c.h.b16 %v106
    %v231 = vpack.c.b16 %v207, %v199
    %v232 = vpack.c.b16 %v208, %v200
    %v233 = vpack.c.b16 %v209, %v201
    %v234 = vpack.c.b16 %v210, %v202
    %v235 = vpack.c.b16 %v211, %v203
    %v236 = vpack.c.b16 %v212, %v204
    %v237 = vpack.c.b16 %v213, %v205
    %v238 = vpack.c.b16 %v214, %v206
    %v239 = vpack.c.b16 %v223, %v215
    %v240 = vpack.c.b16 %v224, %v216
    %v241 = vpack.c.b16 %v225, %v217
    %v242 = vpack.c.b16 %v226, %v218
    %v243 = vpack.c.b16 %v227, %v219
    %v244 = vpack.c.b16 %v228, %v220
    %v245 = vpack.c.b16 %v229, %v221
    %v246 = vpack.c.b16 %v230, %v222
    %vm263 = vcmask 261120
    %v265 = vsel %vm263, %v90, 0
    %267 = vmatprep.subr.bf16.mxu0 %v232
    %268 = vmatpush1.bf16.msra.mxu0 %v231
    %269 = vmatprep.subr.bf16.mxu0 %v240
    %270 = vmatpush1.bf16.msra.mxu0 %v239
    %271 = vmatprep.subr.bf16.mxu0 0
    %272 = vmatpush1.bf16.msra.mxu0 0
    %273 = vmatprep.subr.bf16.mxu0 0
    %274 = vmatpush1.bf16.msra.mxu0 0
    %275 = vmatprep.subr.bf16.mxu0 0
    %276 = vmatpush1.bf16.msra.mxu0 0
    %277 = vmatprep.subr.bf16.mxu0 0
    %278 = vmatpush1.bf16.msra.mxu0 0
    %279 = vmatprep.subr.bf16.mxu0 0
    %280 = vmatpush1.bf16.msra.mxu0 0
    %281 = vmatprep.subr.bf16.mxu0 0
    %282 = vmatpush1.bf16.msra.mxu0 0
    %283 = vmatprep.subr.bf16.mxu0 0
    %284 = vmatpush1.bf16.msra.mxu0 0
    %285 = vmatprep.subr.bf16.mxu0 0
    %286 = vmatpush1.bf16.msra.mxu0 0
    %287 = vmatprep.subr.bf16.mxu0 0
    %288 = vmatpush1.bf16.msra.mxu0 0
    %289 = vmatprep.subr.bf16.mxu0 0
    %290 = vmatpush1.bf16.msra.mxu0 0
    %291 = vmatprep.subr.bf16.mxu0 0
    %292 = vmatpush1.bf16.msra.mxu0 0
    %293 = vmatprep.subr.bf16.mxu0 0
    %294 = vmatpush1.bf16.msra.mxu0 0
    %295 = vmatprep.subr.bf16.mxu0 0
    %296 = vmatpush1.bf16.msra.mxu0 0
    %297 = vmatprep.subr.bf16.mxu0 0
    %298 = vmatpush1.bf16.msra.mxu0 0
    %299 = vmatprep.mubr.bf16.mxu0 0
    %300 = vmatmul.mubr.bf16.gmra.mrb[0].mxu0 %v265
    %v301 = vpop.f32.mrb[0].mxu0
    %v302 = vadd.f32 %v154, %v301
    %v303 = vpop.f32.mrb[0].mxu0
    %v304 = vadd.f32 %v158, %v303
    %v305 = vpop.f32.mrb[0].mxu0
    %v306 = vpop.f32.mrb[0].mxu0
    %307 = vdwg.mxu0
    %308 = vmatprep.subr.bf16.mxu0 %v234
    %309 = vmatpush1.bf16.msra.mxu0 %v233
    %310 = vmatprep.subr.bf16.mxu0 %v242
    %311 = vmatpush1.bf16.msra.mxu0 %v241
    %312 = vmatprep.subr.bf16.mxu0 0
    %313 = vmatpush1.bf16.msra.mxu0 0
    %314 = vmatprep.subr.bf16.mxu0 0
    %315 = vmatpush1.bf16.msra.mxu0 0
    %316 = vmatprep.subr.bf16.mxu0 0
    %317 = vmatpush1.bf16.msra.mxu0 0
    %318 = vmatprep.subr.bf16.mxu0 0
    %319 = vmatpush1.bf16.msra.mxu0 0
    %320 = vmatprep.subr.bf16.mxu0 0
    %321 = vmatpush1.bf16.msra.mxu0 0
    %322 = vmatprep.subr.bf16.mxu0 0
    %323 = vmatpush1.bf16.msra.mxu0 0
    %324 = vmatprep.subr.bf16.mxu0 0
    %325 = vmatpush1.bf16.msra.mxu0 0
    %326 = vmatprep.subr.bf16.mxu0 0
    %327 = vmatpush1.bf16.msra.mxu0 0
    %328 = vmatprep.subr.bf16.mxu0 0
    %329 = vmatpush1.bf16.msra.mxu0 0
    %330 = vmatprep.subr.bf16.mxu0 0
    %331 = vmatpush1.bf16.msra.mxu0 0
    %332 = vmatprep.subr.bf16.mxu0 0
    %333 = vmatpush1.bf16.msra.mxu0 0
    %334 = vmatprep.subr.bf16.mxu0 0
    %335 = vmatpush1.bf16.msra.mxu0 0
    %336 = vmatprep.subr.bf16.mxu0 0
    %337 = vmatpush1.bf16.msra.mxu0 0
    %338 = vmatprep.subr.bf16.mxu0 0
    %339 = vmatpush1.bf16.msra.mxu0 0
    %340 = vmatprep.mubr.bf16.mxu0 0
    %341 = vmatmul.mubr.bf16.gmra.mrb[0].mxu0 %v265
    %v342 = vpop.f32.mrb[0].mxu0
    %v343 = vadd.f32 %v162, %v342
    %v344 = vpop.f32.mrb[0].mxu0
    %v345 = vadd.f32 %v166, %v344
    %v346 = vpop.f32.mrb[0].mxu0
    %v347 = vpop.f32.mrb[0].mxu0
    %348 = vdwg.mxu0
    %349 = vmatprep.subr.bf16.mxu0 %v236
    %350 = vmatpush1.bf16.msra.mxu0 %v235
    %351 = vmatprep.subr.bf16.mxu0 %v244
    %352 = vmatpush1.bf16.msra.mxu0 %v243
    %353 = vmatprep.subr.bf16.mxu0 0
    %354 = vmatpush1.bf16.msra.mxu0 0
    %355 = vmatprep.subr.bf16.mxu0 0
    %356 = vmatpush1.bf16.msra.mxu0 0
    %357 = vmatprep.subr.bf16.mxu0 0
    %358 = vmatpush1.bf16.msra.mxu0 0
    %359 = vmatprep.subr.bf16.mxu0 0
    %360 = vmatpush1.bf16.msra.mxu0 0
    %361 = vmatprep.subr.bf16.mxu0 0
    %362 = vmatpush1.bf16.msra.mxu0 0
    %363 = vmatprep.subr.bf16.mxu0 0
    %364 = vmatpush1.bf16.msra.mxu0 0
    %365 = vmatprep.subr.bf16.mxu0 0
    %366 = vmatpush1.bf16.msra.mxu0 0
    %367 = vmatprep.subr.bf16.mxu0 0
    %368 = vmatpush1.bf16.msra.mxu0 0
    %369 = vmatprep.subr.bf16.mxu0 0
    %370 = vmatpush1.bf16.msra.mxu0 0
    %371 = vmatprep.subr.bf16.mxu0 0
    %372 = vmatpush1.bf16.msra.mxu0 0
    %373 = vmatprep.subr.bf16.mxu0 0
    %374 = vmatpush1.bf16.msra.mxu0 0
    %375 = vmatprep.subr.bf16.mxu0 0
    %376 = vmatpush1.bf16.msra.mxu0 0
    %377 = vmatprep.subr.bf16.mxu0 0
    %378 = vmatpush1.bf16.msra.mxu0 0
    %379 = vmatprep.subr.bf16.mxu0 0
    %380 = vmatpush1.bf16.msra.mxu0 0
    %381 = vmatprep.mubr.bf16.mxu0 0
    %382 = vmatmul.mubr.bf16.gmra.mrb[0].mxu0 %v265
    %v383 = vpop.f32.mrb[0].mxu0
    %v384 = vadd.f32 %v170, %v383
    %v385 = vpop.f32.mrb[0].mxu0
    %v386 = vadd.f32 %v174, %v385
    %v387 = vpop.f32.mrb[0].mxu0
    %v388 = vpop.f32.mrb[0].mxu0
    %389 = vdwg.mxu0
    %390 = vmatprep.subr.bf16.mxu0 %v238
    %391 = vmatpush1.bf16.msra.mxu0 %v237
    %392 = vmatprep.subr.bf16.mxu0 %v246
    %393 = vmatpush1.bf16.msra.mxu0 %v245
    %394 = vmatprep.subr.bf16.mxu0 0
    %395 = vmatpush1.bf16.msra.mxu0 0
    %396 = vmatprep.subr.bf16.mxu0 0
    %397 = vmatpush1.bf16.msra.mxu0 0
    %398 = vmatprep.subr.bf16.mxu0 0
    %399 = vmatpush1.bf16.msra.mxu0 0
    %400 = vmatprep.subr.bf16.mxu0 0
    %401 = vmatpush1.bf16.msra.mxu0 0
    %402 = vmatprep.subr.bf16.mxu0 0
    %403 = vmatpush1.bf16.msra.mxu0 0
    %404 = vmatprep.subr.bf16.mxu0 0
    %405 = vmatpush1.bf16.msra.mxu0 0
    %406 = vmatprep.subr.bf16.mxu0 0
    %407 = vmatpush1.bf16.msra.mxu0 0
    %408 = vmatprep.subr.bf16.mxu0 0
    %409 = vmatpush1.bf16.msra.mxu0 0
    %410 = vmatprep.subr.bf16.mxu0 0
    %411 = vmatpush1.bf16.msra.mxu0 0
    %412 = vmatprep.subr.bf16.mxu0 0
    %413 = vmatpush1.bf16.msra.mxu0 0
    %414 = vmatprep.subr.bf16.mxu0 0
    %415 = vmatpush1.bf16.msra.mxu0 0
    %416 = vmatprep.subr.bf16.mxu0 0
    %417 = vmatpush1.bf16.msra.mxu0 0
    %418 = vmatprep.subr.bf16.mxu0 0
    %419 = vmatpush1.bf16.msra.mxu0 0
    %420 = vmatprep.subr.bf16.mxu0 0
    %421 = vmatpush1.bf16.msra.mxu0 0
    %422 = vmatprep.mubr.bf16.mxu0 0
    %423 = vmatmul.mubr.bf16.gmra.mrb[0].mxu0 %v265
    %v424 = vpop.f32.mrb[0].mxu0
    %v425 = vadd.f32 %v178, %v424
    %v426 = vpop.f32.mrb[0].mxu0
    %v427 = vadd.f32 %v182, %v426
    %v428 = vpop.f32.mrb[0].mxu0
    %v429 = vpop.f32.mrb[0].mxu0
    %430 = vdwg.mxu0
    %v431 = vmax.f32 %v302, 0.0
    %v432 = vmax.f32 %v304, 0.0
    %v433 = vmax.f32 %v343, 0.0
    %v434 = vmax.f32 %v345, 0.0
    %v435 = vmax.f32 %v384, 0.0
    %v436 = vmax.f32 %v386, 0.0
    %v437 = vmax.f32 %v425, 0.0
    %v438 = vmax.f32 %v427, 0.0
    %v439 = vpack.c.bf16 %v431, %v431
    %v440 = vpack.c.bf16 %v432, %v432
    %v441 = vpack.c.bf16 %v433, %v433
    %v442 = vpack.c.bf16 %v434, %v434
    %v443 = vpack.c.bf16 %v435, %v435
    %v444 = vpack.c.bf16 %v436, %v436
    %v445 = vpack.c.bf16 %v437, %v437
    %v446 = vpack.c.bf16 %v438, %v438
    %v447 = vld [vmem:[#allocation6] sm:$0xff]
    %v448 = vld [vmem:[#allocation6 + $0x8] sm:$0xff]
    %v449 = vld [vmem:[#allocation6 + $0x10] sm:$0xff]
    %v450 = vld [vmem:[#allocation6 + $0x18] sm:$0xff]
    %v451 = vld [vmem:[#allocation6 + $0x20] sm:$0xff]
    %v452 = vld [vmem:[#allocation6 + $0x28] sm:$0xff]
    %v453 = vld [vmem:[#allocation6 + $0x30] sm:$0xff]
    %v454 = vld [vmem:[#allocation6 + $0x38] sm:$0xff]
    %v455 = vld [vmem:[#allocation6 + $0x40] sm:$0xff]
    %v456 = vld [vmem:[#allocation6 + $0x48] sm:$0xff]
    %v457 = vld [vmem:[#allocation6 + $0x50] sm:$0xff]
    %v458 = vld [vmem:[#allocation6 + $0x58] sm:$0xff]
    %v459 = vld [vmem:[#allocation6 + $0x60] sm:$0xff]
    %v460 = vld [vmem:[#allocation6 + $0x68] sm:$0xff]
    %v461 = vld [vmem:[#allocation6 + $0x70] sm:$0xff]
    %v462 = vld [vmem:[#allocation6 + $0x78] sm:$0xff]
    %v463 = vld [vmem:[#allocation6 + $0x80] sm:$0xff]
    %v464 = vld [vmem:[#allocation6 + $0x88] sm:$0xff]
    %v465 = vld [vmem:[#allocation6 + $0x90] sm:$0xff]
    %v466 = vld [vmem:[#allocation6 + $0x98] sm:$0xff]
    %v467 = vld [vmem:[#allocation6 + $0xa0] sm:$0xff]
    %v468 = vld [vmem:[#allocation6 + $0xa8] sm:$0xff]
    %v469 = vld [vmem:[#allocation6 + $0xb0] sm:$0xff]
    %v470 = vld [vmem:[#allocation6 + $0xb8] sm:$0xff]
    %v471 = vld [vmem:[#allocation6 + $0xc0] sm:$0xff]
    %v472 = vld [vmem:[#allocation6 + $0xc8] sm:$0xff]
    %v473 = vld [vmem:[#allocation6 + $0xd0] sm:$0xff]
    %v474 = vld [vmem:[#allocation6 + $0xd8] sm:$0xff]
    %v475 = vld [vmem:[#allocation6 + $0xe0] sm:$0xff]
    %v476 = vld [vmem:[#allocation6 + $0xe8] sm:$0xff]
    %v477 = vld [vmem:[#allocation6 + $0xf0] sm:$0xff]
    %v478 = vld [vmem:[#allocation6 + $0xf8] sm:$0xff]
    %v479 = vld [vmem:[#allocation6 + $0x100] sm:$0xff]
    %v480 = vld [vmem:[#allocation6 + $0x108] sm:$0xff]
    %v481 = vld [vmem:[#allocation6 + $0x110] sm:$0xff]
    %v482 = vld [vmem:[#allocation6 + $0x118] sm:$0xff]
    %v483 = vld [vmem:[#allocation6 + $0x120] sm:$0xff]
    %v484 = vld [vmem:[#allocation6 + $0x128] sm:$0xff]
    %v485 = vld [vmem:[#allocation6 + $0x130] sm:$0xff]
    %v486 = vld [vmem:[#allocation6 + $0x138] sm:$0xff]
    %v487 = vld [vmem:[#allocation6 + $0x140] sm:$0xff]
    %v488 = vld [vmem:[#allocation6 + $0x148] sm:$0xff]
    %v489 = vld [vmem:[#allocation6 + $0x150] sm:$0xff]
    %v490 = vld [vmem:[#allocation6 + $0x158] sm:$0xff]
    %v491 = vld [vmem:[#allocation6 + $0x160] sm:$0xff]
    %v492 = vld [vmem:[#allocation6 + $0x168] sm:$0xff]
    %v493 = vld [vmem:[#allocation6 + $0x170] sm:$0xff]
    %v494 = vld [vmem:[#allocation6 + $0x178] sm:$0xff]
    %v495 = vld [vmem:[#allocation6 + $0x180] sm:$0xff]
    %v496 = vld [vmem:[#allocation6 + $0x188] sm:$0xff]
    %v497 = vld [vmem:[#allocation6 + $0x190] sm:$0xff]
    %v498 = vld [vmem:[#allocation6 + $0x198] sm:$0xff]
    %v499 = vld [vmem:[#allocation6 + $0x1a0] sm:$0xff]
    %v500 = vld [vmem:[#allocation6 + $0x1a8] sm:$0xff]
    %v501 = vld [vmem:[#allocation6 + $0x1b0] sm:$0xff]
    %v502 = vld [vmem:[#allocation6 + $0x1b8] sm:$0xff]
    %v503 = vld [vmem:[#allocation6 + $0x1c0] sm:$0xff]
    %v504 = vld [vmem:[#allocation6 + $0x1c8] sm:$0xff]
    %v505 = vld [vmem:[#allocation6 + $0x1d0] sm:$0xff]
    %v506 = vld [vmem:[#allocation6 + $0x1d8] sm:$0xff]
    %v507 = vld [vmem:[#allocation6 + $0x1e0] sm:$0xff]
    %v508 = vld [vmem:[#allocation6 + $0x1e8] sm:$0xff]
    %v509 = vld [vmem:[#allocation6 + $0x1f0] sm:$0xff]
    %v510 = vld [vmem:[#allocation6 + $0x1f8] sm:$0xff]
    %v511 = vld [vmem:[#allocation6 + $0x200] sm:$0xff]
    %v512 = vld [vmem:[#allocation6 + $0x208] sm:$0xff]
    %v513 = vld [vmem:[#allocation6 + $0x210] sm:$0xff]
    %v514 = vld [vmem:[#allocation6 + $0x218] sm:$0xff]
    %v515 = vld [vmem:[#allocation6 + $0x220] sm:$0xff]
    %v516 = vld [vmem:[#allocation6 + $0x228] sm:$0xff]
    %v517 = vld [vmem:[#allocation6 + $0x230] sm:$0xff]
    %v518 = vld [vmem:[#allocation6 + $0x238] sm:$0xff]
    %v519 = vld [vmem:[#allocation6 + $0x240] sm:$0xff]
    %v520 = vld [vmem:[#allocation6 + $0x248] sm:$0xff]
    %v521 = vld [vmem:[#allocation6 + $0x250] sm:$0xff]
    %v522 = vld [vmem:[#allocation6 + $0x258] sm:$0xff]
    %v523 = vld [vmem:[#allocation6 + $0x260] sm:$0xff]
    %v524 = vld [vmem:[#allocation6 + $0x268] sm:$0xff]
    %v525 = vld [vmem:[#allocation6 + $0x270] sm:$0xff]
    %v526 = vld [vmem:[#allocation6 + $0x278] sm:$0xff]
    %v527 = vld [vmem:[#allocation6 + $0x280] sm:$0xff]
    %v528 = vld [vmem:[#allocation6 + $0x288] sm:$0xff]
    %v529 = vld [vmem:[#allocation6 + $0x290] sm:$0xff]
    %v530 = vld [vmem:[#allocation6 + $0x298] sm:$0xff]
    %v531 = vld [vmem:[#allocation6 + $0x2a0] sm:$0xff]
    %v532 = vld [vmem:[#allocation6 + $0x2a8] sm:$0xff]
    %v533 = vld [vmem:[#allocation6 + $0x2b0] sm:$0xff]
    %v534 = vld [vmem:[#allocation6 + $0x2b8] sm:$0xff]
    %v535 = vld [vmem:[#allocation6 + $0x2c0] sm:$0xff]
    %v536 = vld [vmem:[#allocation6 + $0x2c8] sm:$0xff]
    %v537 = vld [vmem:[#allocation6 + $0x2d0] sm:$0xff]
    %v538 = vld [vmem:[#allocation6 + $0x2d8] sm:$0xff]
    %v539 = vld [vmem:[#allocation6 + $0x2e0] sm:$0xff]
    %v540 = vld [vmem:[#allocation6 + $0x2e8] sm:$0xff]
    %v541 = vld [vmem:[#allocation6 + $0x2f0] sm:$0xff]
    %v542 = vld [vmem:[#allocation6 + $0x2f8] sm:$0xff]
    %v543 = vld [vmem:[#allocation6 + $0x300] sm:$0xff]
    %v544 = vld [vmem:[#allocation6 + $0x308] sm:$0xff]
    %v545 = vld [vmem:[#allocation6 + $0x310] sm:$0xff]
    %v546 = vld [vmem:[#allocation6 + $0x318] sm:$0xff]
    %v547 = vld [vmem:[#allocation6 + $0x320] sm:$0xff]
    %v548 = vld [vmem:[#allocation6 + $0x328] sm:$0xff]
    %v549 = vld [vmem:[#allocation6 + $0x330] sm:$0xff]
    %v550 = vld [vmem:[#allocation6 + $0x338] sm:$0xff]
    %v551 = vld [vmem:[#allocation6 + $0x340] sm:$0xff]
    %v552 = vld [vmem:[#allocation6 + $0x348] sm:$0xff]
    %v553 = vld [vmem:[#allocation6 + $0x350] sm:$0xff]
    %v554 = vld [vmem:[#allocation6 + $0x358] sm:$0xff]
    %v555 = vld [vmem:[#allocation6 + $0x360] sm:$0xff]
    %v556 = vld [vmem:[#allocation6 + $0x368] sm:$0xff]
    %v557 = vld [vmem:[#allocation6 + $0x370] sm:$0xff]
    %v558 = vld [vmem:[#allocation6 + $0x378] sm:$0xff]
    %v559 = vld [vmem:[#allocation6 + $0x380] sm:$0xff]
    %v560 = vld [vmem:[#allocation6 + $0x388] sm:$0xff]
    %v561 = vld [vmem:[#allocation6 + $0x390] sm:$0xff]
    %v562 = vld [vmem:[#allocation6 + $0x398] sm:$0xff]
    %v563 = vld [vmem:[#allocation6 + $0x3a0] sm:$0xff]
    %v564 = vld [vmem:[#allocation6 + $0x3a8] sm:$0xff]
    %v565 = vld [vmem:[#allocation6 + $0x3b0] sm:$0xff]
    %v566 = vld [vmem:[#allocation6 + $0x3b8] sm:$0xff]
    %v567 = vld [vmem:[#allocation6 + $0x3c0] sm:$0xff]
    %v568 = vld [vmem:[#allocation6 + $0x3c8] sm:$0xff]
    %v569 = vld [vmem:[#allocation6 + $0x3d0] sm:$0xff]
    %v570 = vld [vmem:[#allocation6 + $0x3d8] sm:$0xff]
    %v571 = vld [vmem:[#allocation6 + $0x3e0] sm:$0xff]
    %v572 = vld [vmem:[#allocation6 + $0x3e8] sm:$0xff]
    %v573 = vld [vmem:[#allocation6 + $0x3f0] sm:$0xff]
    %v574 = vld [vmem:[#allocation6 + $0x3f8] sm:$0xff]
    %v575 = vlaneseq
    %v576 = vshrl.u32 %v575, 7
    %v577 = vsub.s32 1, %v576
    %v578 = vrot.slane %v85, %v577
    %v579 = vlaneseq
    %v580 = vshrl.u32 %v579, 7
    %v581 = vsub.s32 5, %v580
    %v582 = vrot.slane %v85, %v581
    %v583 = vlaneseq
    %v584 = vshrl.u32 %v583, 7
    %v585 = vsub.s32 1, %v584
    %v586 = vrot.slane %v86, %v585
    %v587 = vlaneseq
    %v588 = vshrl.u32 %v587, 7
    %v589 = vsub.s32 5, %v588
    %v590 = vrot.slane %v86, %v589
    %v595 = vlaneseq
    %v596 = vshrl.u32 %v595, 7
    %v597 = vsub.s32 1, %v596
    %v598 = vrot.slane %v578, %v597
    %v599 = vlaneseq
    %v600 = vshrl.u32 %v599, 7
    %v601 = vsub.s32 1, %v600
    %v602 = vrot.slane %v582, %v601
    %v603 = vlaneseq
    %v604 = vshrl.u32 %v603, 7
    %v605 = vsub.s32 1, %v604
    %v606 = vrot.slane %v586, %v605
    %v607 = vlaneseq
    %v608 = vshrl.u32 %v607, 7
    %v609 = vsub.s32 1, %v608
    %v610 = vrot.slane %v590, %v609
    %v739 = vunpack.c.l.b16 %v447
    %v740 = vunpack.c.h.b16 %v447
    %v741 = vunpack.c.l.b16 %v448
    %v742 = vunpack.c.h.b16 %v448
    %v743 = vunpack.c.l.b16 %v449
    %v744 = vunpack.c.h.b16 %v449
    %v745 = vunpack.c.l.b16 %v450
    %v746 = vunpack.c.h.b16 %v450
    %v747 = vunpack.c.l.b16 %v451
    %v748 = vunpack.c.h.b16 %v451
    %v749 = vunpack.c.l.b16 %v452
    %v750 = vunpack.c.h.b16 %v452
    %v751 = vunpack.c.l.b16 %v453
    %v752 = vunpack.c.h.b16 %v453
    %v753 = vunpack.c.l.b16 %v454
    %v754 = vunpack.c.h.b16 %v454
    %v755 = vunpack.c.l.b16 %v455
    %v756 = vunpack.c.h.b16 %v455
    %v757 = vunpack.c.l.b16 %v456
    %v758 = vunpack.c.h.b16 %v456
    %v759 = vunpack.c.l.b16 %v457
    %v760 = vunpack.c.h.b16 %v457
    %v761 = vunpack.c.l.b16 %v458
    %v762 = vunpack.c.h.b16 %v458
    %v763 = vunpack.c.l.b16 %v459
    %v764 = vunpack.c.h.b16 %v459
    %v765 = vunpack.c.l.b16 %v460
    %v766 = vunpack.c.h.b16 %v460
    %v767 = vunpack.c.l.b16 %v461
    %v768 = vunpack.c.h.b16 %v461
    %v769 = vunpack.c.l.b16 %v462
    %v770 = vunpack.c.h.b16 %v462
    %v771 = vunpack.c.l.b16 %v463
    %v772 = vunpack.c.h.b16 %v463
    %v773 = vunpack.c.l.b16 %v464
    %v774 = vunpack.c.h.b16 %v464
    %v775 = vunpack.c.l.b16 %v465
    %v776 = vunpack.c.h.b16 %v465
    %v777 = vunpack.c.l.b16 %v466
    %v778 = vunpack.c.h.b16 %v466
    %v779 = vunpack.c.l.b16 %v467
    %v780 = vunpack.c.h.b16 %v467
    %v781 = vunpack.c.l.b16 %v468
    %v782 = vunpack.c.h.b16 %v468
    %v783 = vunpack.c.l.b16 %v469
    %v784 = vunpack.c.h.b16 %v469
    %v785 = vunpack.c.l.b16 %v470
    %v786 = vunpack.c.h.b16 %v470
    %v787 = vunpack.c.l.b16 %v471
    %v788 = vunpack.c.h.b16 %v471
    %v789 = vunpack.c.l.b16 %v472
    %v790 = vunpack.c.h.b16 %v472
    %v791 = vunpack.c.l.b16 %v473
    %v792 = vunpack.c.h.b16 %v473
    %v793 = vunpack.c.l.b16 %v474
    %v794 = vunpack.c.h.b16 %v474
    %v795 = vunpack.c.l.b16 %v475
    %v796 = vunpack.c.h.b16 %v475
    %v797 = vunpack.c.l.b16 %v476
    %v798 = vunpack.c.h.b16 %v476
    %v799 = vunpack.c.l.b16 %v477
    %v800 = vunpack.c.h.b16 %v477
    %v801 = vunpack.c.l.b16 %v478
    %v802 = vunpack.c.h.b16 %v478
    %v803 = vunpack.c.l.b16 %v479
    %v804 = vunpack.c.h.b16 %v479
    %v805 = vunpack.c.l.b16 %v480
    %v806 = vunpack.c.h.b16 %v480
    %v807 = vunpack.c.l.b16 %v481
    %v808 = vunpack.c.h.b16 %v481
    %v809 = vunpack.c.l.b16 %v482
    %v810 = vunpack.c.h.b16 %v482
    %v811 = vunpack.c.l.b16 %v483
    %v812 = vunpack.c.h.b16 %v483
    %v813 = vunpack.c.l.b16 %v484
    %v814 = vunpack.c.h.b16 %v484
    %v815 = vunpack.c.l.b16 %v485
    %v816 = vunpack.c.h.b16 %v485
    %v817 = vunpack.c.l.b16 %v486
    %v818 = vunpack.c.h.b16 %v486
    %v819 = vunpack.c.l.b16 %v487
    %v820 = vunpack.c.h.b16 %v487
    %v821 = vunpack.c.l.b16 %v488
    %v822 = vunpack.c.h.b16 %v488
    %v823 = vunpack.c.l.b16 %v489
    %v824 = vunpack.c.h.b16 %v489
    %v825 = vunpack.c.l.b16 %v490
    %v826 = vunpack.c.h.b16 %v490
    %v827 = vunpack.c.l.b16 %v491
    %v828 = vunpack.c.h.b16 %v491
    %v829 = vunpack.c.l.b16 %v492
    %v830 = vunpack.c.h.b16 %v492
    %v831 = vunpack.c.l.b16 %v493
    %v832 = vunpack.c.h.b16 %v493
    %v833 = vunpack.c.l.b16 %v494
    %v834 = vunpack.c.h.b16 %v494
    %v835 = vunpack.c.l.b16 %v495
    %v836 = vunpack.c.h.b16 %v495
    %v837 = vunpack.c.l.b16 %v496
    %v838 = vunpack.c.h.b16 %v496
    %v839 = vunpack.c.l.b16 %v497
    %v840 = vunpack.c.h.b16 %v497
    %v841 = vunpack.c.l.b16 %v498
    %v842 = vunpack.c.h.b16 %v498
    %v843 = vunpack.c.l.b16 %v499
    %v844 = vunpack.c.h.b16 %v499
    %v845 = vunpack.c.l.b16 %v500
    %v846 = vunpack.c.h.b16 %v500
    %v847 = vunpack.c.l.b16 %v501
    %v848 = vunpack.c.h.b16 %v501
    %v849 = vunpack.c.l.b16 %v502
    %v850 = vunpack.c.h.b16 %v502
    %v851 = vunpack.c.l.b16 %v503
    %v852 = vunpack.c.h.b16 %v503
    %v853 = vunpack.c.l.b16 %v504
    %v854 = vunpack.c.h.b16 %v504
    %v855 = vunpack.c.l.b16 %v505
    %v856 = vunpack.c.h.b16 %v505
    %v857 = vunpack.c.l.b16 %v506
    %v858 = vunpack.c.h.b16 %v506
    %v859 = vunpack.c.l.b16 %v507
    %v860 = vunpack.c.h.b16 %v507
    %v861 = vunpack.c.l.b16 %v508
    %v862 = vunpack.c.h.b16 %v508
    %v863 = vunpack.c.l.b16 %v509
    %v864 = vunpack.c.h.b16 %v509
    %v865 = vunpack.c.l.b16 %v510
    %v866 = vunpack.c.h.b16 %v510
    %v867 = vunpack.c.l.b16 %v511
    %v868 = vunpack.c.h.b16 %v511
    %v869 = vunpack.c.l.b16 %v512
    %v870 = vunpack.c.h.b16 %v512
    %v871 = vunpack.c.l.b16 %v513
    %v872 = vunpack.c.h.b16 %v513
    %v873 = vunpack.c.l.b16 %v514
    %v874 = vunpack.c.h.b16 %v514
    %v875 = vunpack.c.l.b16 %v515
    %v876 = vunpack.c.h.b16 %v515
    %v877 = vunpack.c.l.b16 %v516
    %v878 = vunpack.c.h.b16 %v516
    %v879 = vunpack.c.l.b16 %v517
    %v880 = vunpack.c.h.b16 %v517
    %v881 = vunpack.c.l.b16 %v518
    %v882 = vunpack.c.h.b16 %v518
    %v883 = vunpack.c.l.b16 %v519
    %v884 = vunpack.c.h.b16 %v519
    %v885 = vunpack.c.l.b16 %v520
    %v886 = vunpack.c.h.b16 %v520
    %v887 = vunpack.c.l.b16 %v521
    %v888 = vunpack.c.h.b16 %v521
    %v889 = vunpack.c.l.b16 %v522
    %v890 = vunpack.c.h.b16 %v522
    %v891 = vunpack.c.l.b16 %v523
    %v892 = vunpack.c.h.b16 %v523
    %v893 = vunpack.c.l.b16 %v524
    %v894 = vunpack.c.h.b16 %v524
    %v895 = vunpack.c.l.b16 %v525
    %v896 = vunpack.c.h.b16 %v525
    %v897 = vunpack.c.l.b16 %v526
    %v898 = vunpack.c.h.b16 %v526
    %v899 = vunpack.c.l.b16 %v527
    %v900 = vunpack.c.h.b16 %v527
    %v901 = vunpack.c.l.b16 %v528
    %v902 = vunpack.c.h.b16 %v528
    %v903 = vunpack.c.l.b16 %v529
    %v904 = vunpack.c.h.b16 %v529
    %v905 = vunpack.c.l.b16 %v530
    %v906 = vunpack.c.h.b16 %v530
    %v907 = vunpack.c.l.b16 %v531
    %v908 = vunpack.c.h.b16 %v531
    %v909 = vunpack.c.l.b16 %v532
    %v910 = vunpack.c.h.b16 %v532
    %v911 = vunpack.c.l.b16 %v533
    %v912 = vunpack.c.h.b16 %v533
    %v913 = vunpack.c.l.b16 %v534
    %v914 = vunpack.c.h.b16 %v534
    %v915 = vunpack.c.l.b16 %v535
    %v916 = vunpack.c.h.b16 %v535
    %v917 = vunpack.c.l.b16 %v536
    %v918 = vunpack.c.h.b16 %v536
    %v919 = vunpack.c.l.b16 %v537
    %v920 = vunpack.c.h.b16 %v537
    %v921 = vunpack.c.l.b16 %v538
    %v922 = vunpack.c.h.b16 %v538
    %v923 = vunpack.c.l.b16 %v539
    %v924 = vunpack.c.h.b16 %v539
    %v925 = vunpack.c.l.b16 %v540
    %v926 = vunpack.c.h.b16 %v540
    %v927 = vunpack.c.l.b16 %v541
    %v928 = vunpack.c.h.b16 %v541
    %v929 = vunpack.c.l.b16 %v542
    %v930 = vunpack.c.h.b16 %v542
    %v931 = vunpack.c.l.b16 %v543
    %v932 = vunpack.c.h.b16 %v543
    %v933 = vunpack.c.l.b16 %v544
    %v934 = vunpack.c.h.b16 %v544
    %v935 = vunpack.c.l.b16 %v545
    %v936 = vunpack.c.h.b16 %v545
    %v937 = vunpack.c.l.b16 %v546
    %v938 = vunpack.c.h.b16 %v546
    %v939 = vunpack.c.l.b16 %v547
    %v940 = vunpack.c.h.b16 %v547
    %v941 = vunpack.c.l.b16 %v548
    %v942 = vunpack.c.h.b16 %v548
    %v943 = vunpack.c.l.b16 %v549
    %v944 = vunpack.c.h.b16 %v549
    %v945 = vunpack.c.l.b16 %v550
    %v946 = vunpack.c.h.b16 %v550
    %v947 = vunpack.c.l.b16 %v551
    %v948 = vunpack.c.h.b16 %v551
    %v949 = vunpack.c.l.b16 %v552
    %v950 = vunpack.c.h.b16 %v552
    %v951 = vunpack.c.l.b16 %v553
    %v952 = vunpack.c.h.b16 %v553
    %v953 = vunpack.c.l.b16 %v554
    %v954 = vunpack.c.h.b16 %v554
    %v955 = vunpack.c.l.b16 %v555
    %v956 = vunpack.c.h.b16 %v555
    %v957 = vunpack.c.l.b16 %v556
    %v958 = vunpack.c.h.b16 %v556
    %v959 = vunpack.c.l.b16 %v557
    %v960 = vunpack.c.h.b16 %v557
    %v961 = vunpack.c.l.b16 %v558
    %v962 = vunpack.c.h.b16 %v558
    %v963 = vunpack.c.l.b16 %v559
    %v964 = vunpack.c.h.b16 %v559
    %v965 = vunpack.c.l.b16 %v560
    %v966 = vunpack.c.h.b16 %v560
    %v967 = vunpack.c.l.b16 %v561
    %v968 = vunpack.c.h.b16 %v561
    %v969 = vunpack.c.l.b16 %v562
    %v970 = vunpack.c.h.b16 %v562
    %v971 = vunpack.c.l.b16 %v563
    %v972 = vunpack.c.h.b16 %v563
    %v973 = vunpack.c.l.b16 %v564
    %v974 = vunpack.c.h.b16 %v564
    %v975 = vunpack.c.l.b16 %v565
    %v976 = vunpack.c.h.b16 %v565
    %v977 = vunpack.c.l.b16 %v566
    %v978 = vunpack.c.h.b16 %v566
    %v979 = vunpack.c.l.b16 %v567
    %v980 = vunpack.c.h.b16 %v567
    %v981 = vunpack.c.l.b16 %v568
    %v982 = vunpack.c.h.b16 %v568
    %v983 = vunpack.c.l.b16 %v569
    %v984 = vunpack.c.h.b16 %v569
    %v985 = vunpack.c.l.b16 %v570
    %v986 = vunpack.c.h.b16 %v570
    %v987 = vunpack.c.l.b16 %v571
    %v988 = vunpack.c.h.b16 %v571
    %v989 = vunpack.c.l.b16 %v572
    %v990 = vunpack.c.h.b16 %v572
    %v991 = vunpack.c.l.b16 %v573
    %v992 = vunpack.c.h.b16 %v573
    %v993 = vunpack.c.l.b16 %v574
    %v994 = vunpack.c.h.b16 %v574
    %v995 = vpack.c.b16 %v743, %v739
    %v996 = vpack.c.b16 %v744, %v740
    %v997 = vpack.c.b16 %v745, %v741
    %v998 = vpack.c.b16 %v746, %v742
    %v999 = vpack.c.b16 %v751, %v747
    %v1000 = vpack.c.b16 %v752, %v748
    %v1001 = vpack.c.b16 %v753, %v749
    %v1002 = vpack.c.b16 %v754, %v750
    %v1003 = vpack.c.b16 %v759, %v755
    %v1004 = vpack.c.b16 %v760, %v756
    %v1005 = vpack.c.b16 %v761, %v757
    %v1006 = vpack.c.b16 %v762, %v758
    %v1007 = vpack.c.b16 %v767, %v763
    %v1008 = vpack.c.b16 %v768, %v764
    %v1009 = vpack.c.b16 %v769, %v765
    %v1010 = vpack.c.b16 %v770, %v766
    %v1011 = vpack.c.b16 %v775, %v771
    %v1012 = vpack.c.b16 %v776, %v772
    %v1013 = vpack.c.b16 %v777, %v773
    %v1014 = vpack.c.b16 %v778, %v774
    %v1015 = vpack.c.b16 %v783, %v779
    %v1016 = vpack.c.b16 %v784, %v780
    %v1017 = vpack.c.b16 %v785, %v781
    %v1018 = vpack.c.b16 %v786, %v782
    %v1019 = vpack.c.b16 %v791, %v787
    %v1020 = vpack.c.b16 %v792, %v788
    %v1021 = vpack.c.b16 %v793, %v789
    %v1022 = vpack.c.b16 %v794, %v790
    %v1023 = vpack.c.b16 %v799, %v795
    %v1024 = vpack.c.b16 %v800, %v796
    %v1025 = vpack.c.b16 %v801, %v797
    %v1026 = vpack.c.b16 %v802, %v798
    %v1027 = vpack.c.b16 %v807, %v803
    %v1028 = vpack.c.b16 %v808, %v804
    %v1029 = vpack.c.b16 %v809, %v805
    %v1030 = vpack.c.b16 %v810, %v806
    %v1031 = vpack.c.b16 %v815, %v811
    %v1032 = vpack.c.b16 %v816, %v812
    %v1033 = vpack.c.b16 %v817, %v813
    %v1034 = vpack.c.b16 %v818, %v814
    %v1035 = vpack.c.b16 %v823, %v819
    %v1036 = vpack.c.b16 %v824, %v820
    %v1037 = vpack.c.b16 %v825, %v821
    %v1038 = vpack.c.b16 %v826, %v822
    %v1039 = vpack.c.b16 %v831, %v827
    %v1040 = vpack.c.b16 %v832, %v828
    %v1041 = vpack.c.b16 %v833, %v829
    %v1042 = vpack.c.b16 %v834, %v830
    %v1043 = vpack.c.b16 %v839, %v835
    %v1044 = vpack.c.b16 %v840, %v836
    %v1045 = vpack.c.b16 %v841, %v837
    %v1046 = vpack.c.b16 %v842, %v838
    %v1047 = vpack.c.b16 %v847, %v843
    %v1048 = vpack.c.b16 %v848, %v844
    %v1049 = vpack.c.b16 %v849, %v845
    %v1050 = vpack.c.b16 %v850, %v846
    %v1051 = vpack.c.b16 %v855, %v851
    %v1052 = vpack.c.b16 %v856, %v852
    %v1053 = vpack.c.b16 %v857, %v853
    %v1054 = vpack.c.b16 %v858, %v854
    %v1055 = vpack.c.b16 %v863, %v859
    %v1056 = vpack.c.b16 %v864, %v860
    %v1057 = vpack.c.b16 %v865, %v861
    %v1058 = vpack.c.b16 %v866, %v862
    %v1059 = vpack.c.b16 %v871, %v867
    %v1060 = vpack.c.b16 %v872, %v868
    %v1061 = vpack.c.b16 %v873, %v869
    %v1062 = vpack.c.b16 %v874, %v870
    %v1063 = vpack.c.b16 %v879, %v875
    %v1064 = vpack.c.b16 %v880, %v876
    %v1065 = vpack.c.b16 %v881, %v877
    %v1066 = vpack.c.b16 %v882, %v878
    %v1067 = vpack.c.b16 %v887, %v883
    %v1068 = vpack.c.b16 %v888, %v884
    %v1069 = vpack.c.b16 %v889, %v885
    %v1070 = vpack.c.b16 %v890, %v886
    %v1071 = vpack.c.b16 %v895, %v891
    %v1072 = vpack.c.b16 %v896, %v892
    %v1073 = vpack.c.b16 %v897, %v893
    %v1074 = vpack.c.b16 %v898, %v894
    %v1075 = vpack.c.b16 %v903, %v899
    %v1076 = vpack.c.b16 %v904, %v900
    %v1077 = vpack.c.b16 %v905, %v901
    %v1078 = vpack.c.b16 %v906, %v902
    %v1079 = vpack.c.b16 %v911, %v907
    %v1080 = vpack.c.b16 %v912, %v908
    %v1081 = vpack.c.b16 %v913, %v909
    %v1082 = vpack.c.b16 %v914, %v910
    %v1083 = vpack.c.b16 %v919, %v915
    %v1084 = vpack.c.b16 %v920, %v916
    %v1085 = vpack.c.b16 %v921, %v917
    %v1086 = vpack.c.b16 %v922, %v918
    %v1087 = vpack.c.b16 %v927, %v923
    %v1088 = vpack.c.b16 %v928, %v924
    %v1089 = vpack.c.b16 %v929, %v925
    %v1090 = vpack.c.b16 %v930, %v926
    %v1091 = vpack.c.b16 %v935, %v931
    %v1092 = vpack.c.b16 %v936, %v932
    %v1093 = vpack.c.b16 %v937, %v933
    %v1094 = vpack.c.b16 %v938, %v934
    %v1095 = vpack.c.b16 %v943, %v939
    %v1096 = vpack.c.b16 %v944, %v940
    %v1097 = vpack.c.b16 %v945, %v941
    %v1098 = vpack.c.b16 %v946, %v942
    %v1099 = vpack.c.b16 %v951, %v947
    %v1100 = vpack.c.b16 %v952, %v948
    %v1101 = vpack.c.b16 %v953, %v949
    %v1102 = vpack.c.b16 %v954, %v950
    %v1103 = vpack.c.b16 %v959, %v955
    %v1104 = vpack.c.b16 %v960, %v956
    %v1105 = vpack.c.b16 %v961, %v957
    %v1106 = vpack.c.b16 %v962, %v958
    %v1107 = vpack.c.b16 %v967, %v963
    %v1108 = vpack.c.b16 %v968, %v964
    %v1109 = vpack.c.b16 %v969, %v965
    %v1110 = vpack.c.b16 %v970, %v966
    %v1111 = vpack.c.b16 %v975, %v971
    %v1112 = vpack.c.b16 %v976, %v972
    %v1113 = vpack.c.b16 %v977, %v973
    %v1114 = vpack.c.b16 %v978, %v974
    %v1115 = vpack.c.b16 %v983, %v979
    %v1116 = vpack.c.b16 %v984, %v980
    %v1117 = vpack.c.b16 %v985, %v981
    %v1118 = vpack.c.b16 %v986, %v982
    %v1119 = vpack.c.b16 %v991, %v987
    %v1120 = vpack.c.b16 %v992, %v988
    %v1121 = vpack.c.b16 %v993, %v989
    %v1122 = vpack.c.b16 %v994, %v990
    %1251 = vmatprep.subr.bf16.mxu0 %v996
    %1252 = vmatpush1.bf16.msra.mxu0 %v995
    %1253 = vmatprep.subr.bf16.mxu0 %v1000
    %1254 = vmatpush1.bf16.msra.mxu0 %v999
    %1255 = vmatprep.subr.bf16.mxu0 %v1004
    %1256 = vmatpush1.bf16.msra.mxu0 %v1003
    %1257 = vmatprep.subr.bf16.mxu0 %v1008
    %1258 = vmatpush1.bf16.msra.mxu0 %v1007
    %1259 = vmatprep.subr.bf16.mxu0 %v1012
    %1260 = vmatpush1.bf16.msra.mxu0 %v1011
    %1261 = vmatprep.subr.bf16.mxu0 %v1016
    %1262 = vmatpush1.bf16.msra.mxu0 %v1015
    %1263 = vmatprep.subr.bf16.mxu0 %v1020
    %1264 = vmatpush1.bf16.msra.mxu0 %v1019
    %1265 = vmatprep.subr.bf16.mxu0 %v1024
    %1266 = vmatpush1.bf16.msra.mxu0 %v1023
    %1267 = vmatprep.subr.bf16.mxu0 %v1028
    %1268 = vmatpush1.bf16.msra.mxu0 %v1027
    %1269 = vmatprep.subr.bf16.mxu0 %v1032
    %1270 = vmatpush1.bf16.msra.mxu0 %v1031
    %1271 = vmatprep.subr.bf16.mxu0 %v1036
    %1272 = vmatpush1.bf16.msra.mxu0 %v1035
    %1273 = vmatprep.subr.bf16.mxu0 %v1040
    %1274 = vmatpush1.bf16.msra.mxu0 %v1039
    %1275 = vmatprep.subr.bf16.mxu0 %v1044
    %1276 = vmatpush1.bf16.msra.mxu0 %v1043
    %1277 = vmatprep.subr.bf16.mxu0 %v1048
    %1278 = vmatpush1.bf16.msra.mxu0 %v1047
    %1279 = vmatprep.subr.bf16.mxu0 %v1052
    %1280 = vmatpush1.bf16.msra.mxu0 %v1051
    %1281 = vmatprep.subr.bf16.mxu0 %v1056
    %1282 = vmatpush1.bf16.msra.mxu0 %v1055
    %1283 = vmatprep.mubr.bf16.mxu0 %v440
    %1284 = vmatmul.mubr.bf16.gmra.mrb[0].mxu0 %v439
    %v1285 = vpop.f32.mrb[0].mxu0
    %v1286 = vadd.f32 %v598, %v1285
    %v1287 = vpop.f32.mrb[0].mxu0
    %v1288 = vadd.f32 %v602, %v1287
    %v1289 = vpop.f32.mrb[0].mxu0
    %v1290 = vpop.f32.mrb[0].mxu0
    %1291 = vdwg.mxu0
    %1292 = vmatprep.subr.bf16.mxu0 %v1060
    %1293 = vmatpush1.bf16.msra.mxu0 %v1059
    %1294 = vmatprep.subr.bf16.mxu0 %v1064
    %1295 = vmatpush1.bf16.msra.mxu0 %v1063
    %1296 = vmatprep.subr.bf16.mxu0 %v1068
    %1297 = vmatpush1.bf16.msra.mxu0 %v1067
    %1298 = vmatprep.subr.bf16.mxu0 %v1072
    %1299 = vmatpush1.bf16.msra.mxu0 %v1071
    %1300 = vmatprep.subr.bf16.mxu0 %v1076
    %1301 = vmatpush1.bf16.msra.mxu0 %v1075
    %1302 = vmatprep.subr.bf16.mxu0 %v1080
    %1303 = vmatpush1.bf16.msra.mxu0 %v1079
    %1304 = vmatprep.subr.bf16.mxu0 %v1084
    %1305 = vmatpush1.bf16.msra.mxu0 %v1083
    %1306 = vmatprep.subr.bf16.mxu0 %v1088
    %1307 = vmatpush1.bf16.msra.mxu0 %v1087
    %1308 = vmatprep.subr.bf16.mxu0 %v1092
    %1309 = vmatpush1.bf16.msra.mxu0 %v1091
    %1310 = vmatprep.subr.bf16.mxu0 %v1096
    %1311 = vmatpush1.bf16.msra.mxu0 %v1095
    %1312 = vmatprep.subr.bf16.mxu0 %v1100
    %1313 = vmatpush1.bf16.msra.mxu0 %v1099
    %1314 = vmatprep.subr.bf16.mxu0 %v1104
    %1315 = vmatpush1.bf16.msra.mxu0 %v1103
    %1316 = vmatprep.subr.bf16.mxu0 %v1108
    %1317 = vmatpush1.bf16.msra.mxu0 %v1107
    %1318 = vmatprep.subr.bf16.mxu0 %v1112
    %1319 = vmatpush1.bf16.msra.mxu0 %v1111
    %1320 = vmatprep.subr.bf16.mxu0 %v1116
    %1321 = vmatpush1.bf16.msra.mxu0 %v1115
    %1322 = vmatprep.subr.bf16.mxu0 %v1120
    %1323 = vmatpush1.bf16.msra.mxu0 %v1119
    %1324 = vmatprep.mubr.bf16.mxu0 %v442
    %1325 = vmatmul.mubr.bf16.gmra.mrb[0].mxu0 %v441
    %v1326 = vpop.f32.mrb[0].mxu0
    %v1327 = vadd.f32 %v1286, %v1326
    %v1328 = vpop.f32.mrb[0].mxu0
    %v1329 = vadd.f32 %v1288, %v1328
    %v1330 = vpop.f32.mrb[0].mxu0
    %v1331 = vpop.f32.mrb[0].mxu0
    %1332 = vdwg.mxu0
    %1333 = vmatprep.subr.bf16.mxu0 %v998
    %1334 = vmatpush1.bf16.msra.mxu0 %v997
    %1335 = vmatprep.subr.bf16.mxu0 %v1002
    %1336 = vmatpush1.bf16.msra.mxu0 %v1001
    %1337 = vmatprep.subr.bf16.mxu0 %v1006
    %1338 = vmatpush1.bf16.msra.mxu0 %v1005
    %1339 = vmatprep.subr.bf16.mxu0 %v1010
    %1340 = vmatpush1.bf16.msra.mxu0 %v1009
    %1341 = vmatprep.subr.bf16.mxu0 %v1014
    %1342 = vmatpush1.bf16.msra.mxu0 %v1013
    %1343 = vmatprep.subr.bf16.mxu0 %v1018
    %1344 = vmatpush1.bf16.msra.mxu0 %v1017
    %1345 = vmatprep.subr.bf16.mxu0 %v1022
    %1346 = vmatpush1.bf16.msra.mxu0 %v1021
    %1347 = vmatprep.subr.bf16.mxu0 %v1026
    %1348 = vmatpush1.bf16.msra.mxu0 %v1025
    %1349 = vmatprep.subr.bf16.mxu0 %v1030
    %1350 = vmatpush1.bf16.msra.mxu0 %v1029
    %1351 = vmatprep.subr.bf16.mxu0 %v1034
    %1352 = vmatpush1.bf16.msra.mxu0 %v1033
    %1353 = vmatprep.subr.bf16.mxu0 %v1038
    %1354 = vmatpush1.bf16.msra.mxu0 %v1037
    %1355 = vmatprep.subr.bf16.mxu0 %v1042
    %1356 = vmatpush1.bf16.msra.mxu0 %v1041
    %1357 = vmatprep.subr.bf16.mxu0 %v1046
    %1358 = vmatpush1.bf16.msra.mxu0 %v1045
    %1359 = vmatprep.subr.bf16.mxu0 %v1050
    %1360 = vmatpush1.bf16.msra.mxu0 %v1049
    %1361 = vmatprep.subr.bf16.mxu0 %v1054
    %1362 = vmatpush1.bf16.msra.mxu0 %v1053
    %1363 = vmatprep.subr.bf16.mxu0 %v1058
    %1364 = vmatpush1.bf16.msra.mxu0 %v1057
    %1365 = vmatprep.mubr.bf16.mxu0 %v440
    %1366 = vmatmul.mubr.bf16.gmra.mrb[0].mxu0 %v439
    %v1367 = vpop.f32.mrb[0].mxu0
    %v1368 = vadd.f32 %v606, %v1367
    %v1369 = vpop.f32.mrb[0].mxu0
    %v1370 = vadd.f32 %v610, %v1369
    %v1371 = vpop.f32.mrb[0].mxu0
    %v1372 = vpop.f32.mrb[0].mxu0
    %1373 = vdwg.mxu0
    %1374 = vmatprep.subr.bf16.mxu0 %v1062
    %1375 = vmatpush1.bf16.msra.mxu0 %v1061
    %1376 = vmatprep.subr.bf16.mxu0 %v1066
    %1377 = vmatpush1.bf16.msra.mxu0 %v1065
    %1378 = vmatprep.subr.bf16.mxu0 %v1070
    %1379 = vmatpush1.bf16.msra.mxu0 %v1069
    %1380 = vmatprep.subr.bf16.mxu0 %v1074
    %1381 = vmatpush1.bf16.msra.mxu0 %v1073
    %1382 = vmatprep.subr.bf16.mxu0 %v1078
    %1383 = vmatpush1.bf16.msra.mxu0 %v1077
    %1384 = vmatprep.subr.bf16.mxu0 %v1082
    %1385 = vmatpush1.bf16.msra.mxu0 %v1081
    %1386 = vmatprep.subr.bf16.mxu0 %v1086
    %1387 = vmatpush1.bf16.msra.mxu0 %v1085
    %1388 = vmatprep.subr.bf16.mxu0 %v1090
    %1389 = vmatpush1.bf16.msra.mxu0 %v1089
    %1390 = vmatprep.subr.bf16.mxu0 %v1094
    %1391 = vmatpush1.bf16.msra.mxu0 %v1093
    %1392 = vmatprep.subr.bf16.mxu0 %v1098
    %1393 = vmatpush1.bf16.msra.mxu0 %v1097
    %1394 = vmatprep.subr.bf16.mxu0 %v1102
    %1395 = vmatpush1.bf16.msra.mxu0 %v1101
    %1396 = vmatprep.subr.bf16.mxu0 %v1106
    %1397 = vmatpush1.bf16.msra.mxu0 %v1105
    %1398 = vmatprep.subr.bf16.mxu0 %v1110
    %1399 = vmatpush1.bf16.msra.mxu0 %v1109
    %1400 = vmatprep.subr.bf16.mxu0 %v1114
    %1401 = vmatpush1.bf16.msra.mxu0 %v1113
    %1402 = vmatprep.subr.bf16.mxu0 %v1118
    %1403 = vmatpush1.bf16.msra.mxu0 %v1117
    %1404 = vmatprep.subr.bf16.mxu0 %v1122
    %1405 = vmatpush1.bf16.msra.mxu0 %v1121
    %1406 = vmatprep.mubr.bf16.mxu0 %v442
    %1407 = vmatmul.mubr.bf16.gmra.mrb[0].mxu0 %v441
    %v1408 = vpop.f32.mrb[0].mxu0
    %v1409 = vadd.f32 %v1368, %v1408
    %v1410 = vpop.f32.mrb[0].mxu0
    %v1411 = vadd.f32 %v1370, %v1410
    %v1412 = vpop.f32.mrb[0].mxu0
    %v1413 = vpop.f32.mrb[0].mxu0
    %1414 = vdwg.mxu0
    %v1415 = vmax.f32 %v1327, 0.0
    %v1416 = vmax.f32 %v1329, 0.0
    %v1417 = vmax.f32 %v1409, 0.0
    %v1418 = vmax.f32 %v1411, 0.0
    %v1419 = vpack.c.bf16 %v1415, %v1415
    %v1420 = vpack.c.bf16 %v1416, %v1416
    %v1421 = vpack.c.bf16 %v1417, %v1417
    %v1422 = vpack.c.bf16 %v1418, %v1418
    %v1423 = vld [vmem:[#allocation6 + $0x400] sm:$0xff]
    %v1424 = vld [vmem:[#allocation6 + $0x408] sm:$0xff]
    %v1425 = vld [vmem:[#allocation6 + $0x410] sm:$0xff]
    %v1426 = vld [vmem:[#allocation6 + $0x418] sm:$0xff]
    %v1427 = vld [vmem:[#allocation6 + $0x420] sm:$0xff]
    %v1428 = vld [vmem:[#allocation6 + $0x428] sm:$0xff]
    %v1429 = vld [vmem:[#allocation6 + $0x430] sm:$0xff]
    %v1430 = vld [vmem:[#allocation6 + $0x438] sm:$0xff]
    %v1431 = vld [vmem:[#allocation6 + $0x440] sm:$0xff]
    %v1432 = vld [vmem:[#allocation6 + $0x448] sm:$0xff]
    %v1433 = vld [vmem:[#allocation6 + $0x450] sm:$0xff]
    %v1434 = vld [vmem:[#allocation6 + $0x458] sm:$0xff]
    %v1435 = vld [vmem:[#allocation6 + $0x460] sm:$0xff]
    %v1436 = vld [vmem:[#allocation6 + $0x468] sm:$0xff]
    %v1437 = vld [vmem:[#allocation6 + $0x470] sm:$0xff]
    %v1438 = vld [vmem:[#allocation6 + $0x478] sm:$0xff]
    %v1439 = vld [vmem:[#allocation6 + $0x480] sm:$0xff]
    %v1440 = vld [vmem:[#allocation6 + $0x488] sm:$0xff]
    %v1441 = vld [vmem:[#allocation6 + $0x490] sm:$0xff]
    %v1442 = vld [vmem:[#allocation6 + $0x498] sm:$0xff]
    %v1443 = vld [vmem:[#allocation6 + $0x4a0] sm:$0xff]
    %v1444 = vld [vmem:[#allocation6 + $0x4a8] sm:$0xff]
    %v1445 = vld [vmem:[#allocation6 + $0x4b0] sm:$0xff]
    %v1446 = vld [vmem:[#allocation6 + $0x4b8] sm:$0xff]
    %v1447 = vld [vmem:[#allocation6 + $0x4c0] sm:$0xff]
    %v1448 = vld [vmem:[#allocation6 + $0x4c8] sm:$0xff]
    %v1449 = vld [vmem:[#allocation6 + $0x4d0] sm:$0xff]
    %v1450 = vld [vmem:[#allocation6 + $0x4d8] sm:$0xff]
    %v1451 = vld [vmem:[#allocation6 + $0x4e0] sm:$0xff]
    %v1452 = vld [vmem:[#allocation6 + $0x4e8] sm:$0xff]
    %v1453 = vld [vmem:[#allocation6 + $0x4f0] sm:$0xff]
    %v1454 = vld [vmem:[#allocation6 + $0x4f8] sm:$0xff]
    %v1455 = vld [vmem:[#allocation6 + $0x500] sm:$0xff]
    %v1456 = vld [vmem:[#allocation6 + $0x508] sm:$0xff]
    %v1457 = vld [vmem:[#allocation6 + $0x510] sm:$0xff]
    %v1458 = vld [vmem:[#allocation6 + $0x518] sm:$0xff]
    %v1459 = vld [vmem:[#allocation6 + $0x520] sm:$0xff]
    %v1460 = vld [vmem:[#allocation6 + $0x528] sm:$0xff]
    %v1461 = vld [vmem:[#allocation6 + $0x530] sm:$0xff]
    %v1462 = vld [vmem:[#allocation6 + $0x538] sm:$0xff]
    %v1463 = vld [vmem:[#allocation6 + $0x540] sm:$0xff]
    %v1464 = vld [vmem:[#allocation6 + $0x548] sm:$0xff]
    %v1465 = vld [vmem:[#allocation6 + $0x550] sm:$0xff]
    %v1466 = vld [vmem:[#allocation6 + $0x558] sm:$0xff]
    %v1467 = vld [vmem:[#allocation6 + $0x560] sm:$0xff]
    %v1468 = vld [vmem:[#allocation6 + $0x568] sm:$0xff]
    %v1469 = vld [vmem:[#allocation6 + $0x570] sm:$0xff]
    %v1470 = vld [vmem:[#allocation6 + $0x578] sm:$0xff]
    %v1471 = vld [vmem:[#allocation6 + $0x580] sm:$0xff]
    %v1472 = vld [vmem:[#allocation6 + $0x588] sm:$0xff]
    %v1473 = vld [vmem:[#allocation6 + $0x590] sm:$0xff]
    %v1474 = vld [vmem:[#allocation6 + $0x598] sm:$0xff]
    %v1475 = vld [vmem:[#allocation6 + $0x5a0] sm:$0xff]
    %v1476 = vld [vmem:[#allocation6 + $0x5a8] sm:$0xff]
    %v1477 = vld [vmem:[#allocation6 + $0x5b0] sm:$0xff]
    %v1478 = vld [vmem:[#allocation6 + $0x5b8] sm:$0xff]
    %v1479 = vld [vmem:[#allocation6 + $0x5c0] sm:$0xff]
    %v1480 = vld [vmem:[#allocation6 + $0x5c8] sm:$0xff]
    %v1481 = vld [vmem:[#allocation6 + $0x5d0] sm:$0xff]
    %v1482 = vld [vmem:[#allocation6 + $0x5d8] sm:$0xff]
    %v1483 = vld [vmem:[#allocation6 + $0x5e0] sm:$0xff]
    %v1484 = vld [vmem:[#allocation6 + $0x5e8] sm:$0xff]
    %v1485 = vld [vmem:[#allocation6 + $0x5f0] sm:$0xff]
    %v1486 = vld [vmem:[#allocation6 + $0x5f8] sm:$0xff]
    %v1487 = vld [vmem:[#allocation6 + $0x600] sm:$0xff]
    %v1488 = vld [vmem:[#allocation6 + $0x608] sm:$0xff]
    %v1489 = vld [vmem:[#allocation6 + $0x610] sm:$0xff]
    %v1490 = vld [vmem:[#allocation6 + $0x618] sm:$0xff]
    %v1491 = vld [vmem:[#allocation6 + $0x620] sm:$0xff]
    %v1492 = vld [vmem:[#allocation6 + $0x628] sm:$0xff]
    %v1493 = vld [vmem:[#allocation6 + $0x630] sm:$0xff]
    %v1494 = vld [vmem:[#allocation6 + $0x638] sm:$0xff]
    %v1495 = vld [vmem:[#allocation6 + $0x640] sm:$0xff]
    %v1496 = vld [vmem:[#allocation6 + $0x648] sm:$0xff]
    %v1497 = vld [vmem:[#allocation6 + $0x650] sm:$0xff]
    %v1498 = vld [vmem:[#allocation6 + $0x658] sm:$0xff]
    %v1499 = vld [vmem:[#allocation6 + $0x660] sm:$0xff]
    %v1500 = vld [vmem:[#allocation6 + $0x668] sm:$0xff]
    %v1501 = vld [vmem:[#allocation6 + $0x670] sm:$0xff]
    %v1502 = vld [vmem:[#allocation6 + $0x678] sm:$0xff]
    %v1503 = vld [vmem:[#allocation6 + $0x680] sm:$0xff]
    %v1504 = vld [vmem:[#allocation6 + $0x688] sm:$0xff]
    %v1505 = vld [vmem:[#allocation6 + $0x690] sm:$0xff]
    %v1506 = vld [vmem:[#allocation6 + $0x698] sm:$0xff]
    %v1507 = vld [vmem:[#allocation6 + $0x6a0] sm:$0xff]
    %v1508 = vld [vmem:[#allocation6 + $0x6a8] sm:$0xff]
    %v1509 = vld [vmem:[#allocation6 + $0x6b0] sm:$0xff]
    %v1510 = vld [vmem:[#allocation6 + $0x6b8] sm:$0xff]
    %v1511 = vld [vmem:[#allocation6 + $0x6c0] sm:$0xff]
    %v1512 = vld [vmem:[#allocation6 + $0x6c8] sm:$0xff]
    %v1513 = vld [vmem:[#allocation6 + $0x6d0] sm:$0xff]
    %v1514 = vld [vmem:[#allocation6 + $0x6d8] sm:$0xff]
    %v1515 = vld [vmem:[#allocation6 + $0x6e0] sm:$0xff]
    %v1516 = vld [vmem:[#allocation6 + $0x6e8] sm:$0xff]
    %v1517 = vld [vmem:[#allocation6 + $0x6f0] sm:$0xff]
    %v1518 = vld [vmem:[#allocation6 + $0x6f8] sm:$0xff]
    %v1519 = vld [vmem:[#allocation6 + $0x700] sm:$0xff]
    %v1520 = vld [vmem:[#allocation6 + $0x708] sm:$0xff]
    %v1521 = vld [vmem:[#allocation6 + $0x710] sm:$0xff]
    %v1522 = vld [vmem:[#allocation6 + $0x718] sm:$0xff]
    %v1523 = vld [vmem:[#allocation6 + $0x720] sm:$0xff]
    %v1524 = vld [vmem:[#allocation6 + $0x728] sm:$0xff]
    %v1525 = vld [vmem:[#allocation6 + $0x730] sm:$0xff]
    %v1526 = vld [vmem:[#allocation6 + $0x738] sm:$0xff]
    %v1527 = vld [vmem:[#allocation6 + $0x740] sm:$0xff]
    %v1528 = vld [vmem:[#allocation6 + $0x748] sm:$0xff]
    %v1529 = vld [vmem:[#allocation6 + $0x750] sm:$0xff]
    %v1530 = vld [vmem:[#allocation6 + $0x758] sm:$0xff]
    %v1531 = vld [vmem:[#allocation6 + $0x760] sm:$0xff]
    %v1532 = vld [vmem:[#allocation6 + $0x768] sm:$0xff]
    %v1533 = vld [vmem:[#allocation6 + $0x770] sm:$0xff]
    %v1534 = vld [vmem:[#allocation6 + $0x778] sm:$0xff]
    %v1535 = vld [vmem:[#allocation6 + $0x780] sm:$0xff]
    %v1536 = vld [vmem:[#allocation6 + $0x788] sm:$0xff]
    %v1537 = vld [vmem:[#allocation6 + $0x790] sm:$0xff]
    %v1538 = vld [vmem:[#allocation6 + $0x798] sm:$0xff]
    %v1539 = vld [vmem:[#allocation6 + $0x7a0] sm:$0xff]
    %v1540 = vld [vmem:[#allocation6 + $0x7a8] sm:$0xff]
    %v1541 = vld [vmem:[#allocation6 + $0x7b0] sm:$0xff]
    %v1542 = vld [vmem:[#allocation6 + $0x7b8] sm:$0xff]
    %v1543 = vld [vmem:[#allocation6 + $0x7c0] sm:$0xff]
    %v1544 = vld [vmem:[#allocation6 + $0x7c8] sm:$0xff]
    %v1545 = vld [vmem:[#allocation6 + $0x7d0] sm:$0xff]
    %v1546 = vld [vmem:[#allocation6 + $0x7d8] sm:$0xff]
    %v1547 = vld [vmem:[#allocation6 + $0x7e0] sm:$0xff]
    %v1548 = vld [vmem:[#allocation6 + $0x7e8] sm:$0xff]
    %v1549 = vld [vmem:[#allocation6 + $0x7f0] sm:$0xff]
    %v1550 = vld [vmem:[#allocation6 + $0x7f8] sm:$0xff]
    %v1551 = vlaneseq
    %v1552 = vshrl.u32 %v1551, 7
    %v1553 = vsub.s32 1, %v1552
    %v1554 = vrot.slane %v87, %v1553
    %v1555 = vlaneseq
    %v1556 = vshrl.u32 %v1555, 7
    %v1557 = vsub.s32 5, %v1556
    %v1558 = vrot.slane %v87, %v1557
    %v1559 = vlaneseq
    %v1560 = vshrl.u32 %v1559, 7
    %v1561 = vsub.s32 1, %v1560
    %v1562 = vrot.slane %v88, %v1561
    %v1563 = vlaneseq
    %v1564 = vshrl.u32 %v1563, 7
    %v1565 = vsub.s32 5, %v1564
    %v1566 = vrot.slane %v88, %v1565
    %v1571 = vlaneseq
    %v1572 = vshrl.u32 %v1571, 7
    %v1573 = vsub.s32 1, %v1572
    %v1574 = vrot.slane %v1554, %v1573
    %v1575 = vlaneseq
    %v1576 = vshrl.u32 %v1575, 7
    %v1577 = vsub.s32 1, %v1576
    %v1578 = vrot.slane %v1558, %v1577
    %v1579 = vlaneseq
    %v1580 = vshrl.u32 %v1579, 7
    %v1581 = vsub.s32 1, %v1580
    %v1582 = vrot.slane %v1562, %v1581
    %v1583 = vlaneseq
    %v1584 = vshrl.u32 %v1583, 7
    %v1585 = vsub.s32 1, %v1584
    %v1586 = vrot.slane %v1566, %v1585
    %v1715 = vunpack.c.l.b16 %v1423
    %v1716 = vunpack.c.h.b16 %v1423
    %v1717 = vunpack.c.l.b16 %v1424
    %v1718 = vunpack.c.h.b16 %v1424
    %v1719 = vunpack.c.l.b16 %v1425
    %v1720 = vunpack.c.h.b16 %v1425
    %v1721 = vunpack.c.l.b16 %v1426
    %v1722 = vunpack.c.h.b16 %v1426
    %v1723 = vunpack.c.l.b16 %v1427
    %v1724 = vunpack.c.h.b16 %v1427
    %v1725 = vunpack.c.l.b16 %v1428
    %v1726 = vunpack.c.h.b16 %v1428
    %v1727 = vunpack.c.l.b16 %v1429
    %v1728 = vunpack.c.h.b16 %v1429
    %v1729 = vunpack.c.l.b16 %v1430
    %v1730 = vunpack.c.h.b16 %v1430
    %v1731 = vunpack.c.l.b16 %v1431
    %v1732 = vunpack.c.h.b16 %v1431
    %v1733 = vunpack.c.l.b16 %v1432
    %v1734 = vunpack.c.h.b16 %v1432
    %v1735 = vunpack.c.l.b16 %v1433
    %v1736 = vunpack.c.h.b16 %v1433
    %v1737 = vunpack.c.l.b16 %v1434
    %v1738 = vunpack.c.h.b16 %v1434
    %v1739 = vunpack.c.l.b16 %v1435
    %v1740 = vunpack.c.h.b16 %v1435
    %v1741 = vunpack.c.l.b16 %v1436
    %v1742 = vunpack.c.h.b16 %v1436
    %v1743 = vunpack.c.l.b16 %v1437
    %v1744 = vunpack.c.h.b16 %v1437
    %v1745 = vunpack.c.l.b16 %v1438
    %v1746 = vunpack.c.h.b16 %v1438
    %v1747 = vunpack.c.l.b16 %v1439
    %v1748 = vunpack.c.h.b16 %v1439
    %v1749 = vunpack.c.l.b16 %v1440
    %v1750 = vunpack.c.h.b16 %v1440
    %v1751 = vunpack.c.l.b16 %v1441
    %v1752 = vunpack.c.h.b16 %v1441
    %v1753 = vunpack.c.l.b16 %v1442
    %v1754 = vunpack.c.h.b16 %v1442
    %v1755 = vunpack.c.l.b16 %v1443
    %v1756 = vunpack.c.h.b16 %v1443
    %v1757 = vunpack.c.l.b16 %v1444
    %v1758 = vunpack.c.h.b16 %v1444
    %v1759 = vunpack.c.l.b16 %v1445
    %v1760 = vunpack.c.h.b16 %v1445
    %v1761 = vunpack.c.l.b16 %v1446
    %v1762 = vunpack.c.h.b16 %v1446
    %v1763 = vunpack.c.l.b16 %v1447
    %v1764 = vunpack.c.h.b16 %v1447
    %v1765 = vunpack.c.l.b16 %v1448
    %v1766 = vunpack.c.h.b16 %v1448
    %v1767 = vunpack.c.l.b16 %v1449
    %v1768 = vunpack.c.h.b16 %v1449
    %v1769 = vunpack.c.l.b16 %v1450
    %v1770 = vunpack.c.h.b16 %v1450
    %v1771 = vunpack.c.l.b16 %v1451
    %v1772 = vunpack.c.h.b16 %v1451
    %v1773 = vunpack.c.l.b16 %v1452
    %v1774 = vunpack.c.h.b16 %v1452
    %v1775 = vunpack.c.l.b16 %v1453
    %v1776 = vunpack.c.h.b16 %v1453
    %v1777 = vunpack.c.l.b16 %v1454
    %v1778 = vunpack.c.h.b16 %v1454
    %v1779 = vunpack.c.l.b16 %v1455
    %v1780 = vunpack.c.h.b16 %v1455
    %v1781 = vunpack.c.l.b16 %v1456
    %v1782 = vunpack.c.h.b16 %v1456
    %v1783 = vunpack.c.l.b16 %v1457
    %v1784 = vunpack.c.h.b16 %v1457
    %v1785 = vunpack.c.l.b16 %v1458
    %v1786 = vunpack.c.h.b16 %v1458
    %v1787 = vunpack.c.l.b16 %v1459
    %v1788 = vunpack.c.h.b16 %v1459
    %v1789 = vunpack.c.l.b16 %v1460
    %v1790 = vunpack.c.h.b16 %v1460
    %v1791 = vunpack.c.l.b16 %v1461
    %v1792 = vunpack.c.h.b16 %v1461
    %v1793 = vunpack.c.l.b16 %v1462
    %v1794 = vunpack.c.h.b16 %v1462
    %v1795 = vunpack.c.l.b16 %v1463
    %v1796 = vunpack.c.h.b16 %v1463
    %v1797 = vunpack.c.l.b16 %v1464
    %v1798 = vunpack.c.h.b16 %v1464
    %v1799 = vunpack.c.l.b16 %v1465
    %v1800 = vunpack.c.h.b16 %v1465
    %v1801 = vunpack.c.l.b16 %v1466
    %v1802 = vunpack.c.h.b16 %v1466
    %v1803 = vunpack.c.l.b16 %v1467
    %v1804 = vunpack.c.h.b16 %v1467
    %v1805 = vunpack.c.l.b16 %v1468
    %v1806 = vunpack.c.h.b16 %v1468
    %v1807 = vunpack.c.l.b16 %v1469
    %v1808 = vunpack.c.h.b16 %v1469
    %v1809 = vunpack.c.l.b16 %v1470
    %v1810 = vunpack.c.h.b16 %v1470
    %v1811 = vunpack.c.l.b16 %v1471
    %v1812 = vunpack.c.h.b16 %v1471
    %v1813 = vunpack.c.l.b16 %v1472
    %v1814 = vunpack.c.h.b16 %v1472
    %v1815 = vunpack.c.l.b16 %v1473
    %v1816 = vunpack.c.h.b16 %v1473
    %v1817 = vunpack.c.l.b16 %v1474
    %v1818 = vunpack.c.h.b16 %v1474
    %v1819 = vunpack.c.l.b16 %v1475
    %v1820 = vunpack.c.h.b16 %v1475
    %v1821 = vunpack.c.l.b16 %v1476
    %v1822 = vunpack.c.h.b16 %v1476
    %v1823 = vunpack.c.l.b16 %v1477
    %v1824 = vunpack.c.h.b16 %v1477
    %v1825 = vunpack.c.l.b16 %v1478
    %v1826 = vunpack.c.h.b16 %v1478
    %v1827 = vunpack.c.l.b16 %v1479
    %v1828 = vunpack.c.h.b16 %v1479
    %v1829 = vunpack.c.l.b16 %v1480
    %v1830 = vunpack.c.h.b16 %v1480
    %v1831 = vunpack.c.l.b16 %v1481
    %v1832 = vunpack.c.h.b16 %v1481
    %v1833 = vunpack.c.l.b16 %v1482
    %v1834 = vunpack.c.h.b16 %v1482
    %v1835 = vunpack.c.l.b16 %v1483
    %v1836 = vunpack.c.h.b16 %v1483
    %v1837 = vunpack.c.l.b16 %v1484
    %v1838 = vunpack.c.h.b16 %v1484
    %v1839 = vunpack.c.l.b16 %v1485
    %v1840 = vunpack.c.h.b16 %v1485
    %v1841 = vunpack.c.l.b16 %v1486
    %v1842 = vunpack.c.h.b16 %v1486
    %v1843 = vunpack.c.l.b16 %v1487
    %v1844 = vunpack.c.h.b16 %v1487
    %v1845 = vunpack.c.l.b16 %v1488
    %v1846 = vunpack.c.h.b16 %v1488
    %v1847 = vunpack.c.l.b16 %v1489
    %v1848 = vunpack.c.h.b16 %v1489
    %v1849 = vunpack.c.l.b16 %v1490
    %v1850 = vunpack.c.h.b16 %v1490
    %v1851 = vunpack.c.l.b16 %v1491
    %v1852 = vunpack.c.h.b16 %v1491
    %v1853 = vunpack.c.l.b16 %v1492
    %v1854 = vunpack.c.h.b16 %v1492
    %v1855 = vunpack.c.l.b16 %v1493
    %v1856 = vunpack.c.h.b16 %v1493
    %v1857 = vunpack.c.l.b16 %v1494
    %v1858 = vunpack.c.h.b16 %v1494
    %v1859 = vunpack.c.l.b16 %v1495
    %v1860 = vunpack.c.h.b16 %v1495
    %v1861 = vunpack.c.l.b16 %v1496
    %v1862 = vunpack.c.h.b16 %v1496
    %v1863 = vunpack.c.l.b16 %v1497
    %v1864 = vunpack.c.h.b16 %v1497
    %v1865 = vunpack.c.l.b16 %v1498
    %v1866 = vunpack.c.h.b16 %v1498
    %v1867 = vunpack.c.l.b16 %v1499
    %v1868 = vunpack.c.h.b16 %v1499
    %v1869 = vunpack.c.l.b16 %v1500
    %v1870 = vunpack.c.h.b16 %v1500
    %v1871 = vunpack.c.l.b16 %v1501
    %v1872 = vunpack.c.h.b16 %v1501
    %v1873 = vunpack.c.l.b16 %v1502
    %v1874 = vunpack.c.h.b16 %v1502
    %v1875 = vunpack.c.l.b16 %v1503
    %v1876 = vunpack.c.h.b16 %v1503
    %v1877 = vunpack.c.l.b16 %v1504
    %v1878 = vunpack.c.h.b16 %v1504
    %v1879 = vunpack.c.l.b16 %v1505
    %v1880 = vunpack.c.h.b16 %v1505
    %v1881 = vunpack.c.l.b16 %v1506
    %v1882 = vunpack.c.h.b16 %v1506
    %v1883 = vunpack.c.l.b16 %v1507
    %v1884 = vunpack.c.h.b16 %v1507
    %v1885 = vunpack.c.l.b16 %v1508
    %v1886 = vunpack.c.h.b16 %v1508
    %v1887 = vunpack.c.l.b16 %v1509
    %v1888 = vunpack.c.h.b16 %v1509
    %v1889 = vunpack.c.l.b16 %v1510
    %v1890 = vunpack.c.h.b16 %v1510
    %v1891 = vunpack.c.l.b16 %v1511
    %v1892 = vunpack.c.h.b16 %v1511
    %v1893 = vunpack.c.l.b16 %v1512
    %v1894 = vunpack.c.h.b16 %v1512
    %v1895 = vunpack.c.l.b16 %v1513
    %v1896 = vunpack.c.h.b16 %v1513
    %v1897 = vunpack.c.l.b16 %v1514
    %v1898 = vunpack.c.h.b16 %v1514
    %v1899 = vunpack.c.l.b16 %v1515
    %v1900 = vunpack.c.h.b16 %v1515
    %v1901 = vunpack.c.l.b16 %v1516
    %v1902 = vunpack.c.h.b16 %v1516
    %v1903 = vunpack.c.l.b16 %v1517
    %v1904 = vunpack.c.h.b16 %v1517
    %v1905 = vunpack.c.l.b16 %v1518
    %v1906 = vunpack.c.h.b16 %v1518
    %v1907 = vunpack.c.l.b16 %v1519
    %v1908 = vunpack.c.h.b16 %v1519
    %v1909 = vunpack.c.l.b16 %v1520
    %v1910 = vunpack.c.h.b16 %v1520
    %v1911 = vunpack.c.l.b16 %v1521
    %v1912 = vunpack.c.h.b16 %v1521
    %v1913 = vunpack.c.l.b16 %v1522
    %v1914 = vunpack.c.h.b16 %v1522
    %v1915 = vunpack.c.l.b16 %v1523
    %v1916 = vunpack.c.h.b16 %v1523
    %v1917 = vunpack.c.l.b16 %v1524
    %v1918 = vunpack.c.h.b16 %v1524
    %v1919 = vunpack.c.l.b16 %v1525
    %v1920 = vunpack.c.h.b16 %v1525
    %v1921 = vunpack.c.l.b16 %v1526
    %v1922 = vunpack.c.h.b16 %v1526
    %v1923 = vunpack.c.l.b16 %v1527
    %v1924 = vunpack.c.h.b16 %v1527
    %v1925 = vunpack.c.l.b16 %v1528
    %v1926 = vunpack.c.h.b16 %v1528
    %v1927 = vunpack.c.l.b16 %v1529
    %v1928 = vunpack.c.h.b16 %v1529
    %v1929 = vunpack.c.l.b16 %v1530
    %v1930 = vunpack.c.h.b16 %v1530
    %v1931 = vunpack.c.l.b16 %v1531
    %v1932 = vunpack.c.h.b16 %v1531
    %v1933 = vunpack.c.l.b16 %v1532
    %v1934 = vunpack.c.h.b16 %v1532
    %v1935 = vunpack.c.l.b16 %v1533
    %v1936 = vunpack.c.h.b16 %v1533
    %v1937 = vunpack.c.l.b16 %v1534
    %v1938 = vunpack.c.h.b16 %v1534
    %v1939 = vunpack.c.l.b16 %v1535
    %v1940 = vunpack.c.h.b16 %v1535
    %v1941 = vunpack.c.l.b16 %v1536
    %v1942 = vunpack.c.h.b16 %v1536
    %v1943 = vunpack.c.l.b16 %v1537
    %v1944 = vunpack.c.h.b16 %v1537
    %v1945 = vunpack.c.l.b16 %v1538
    %v1946 = vunpack.c.h.b16 %v1538
    %v1947 = vunpack.c.l.b16 %v1539
    %v1948 = vunpack.c.h.b16 %v1539
    %v1949 = vunpack.c.l.b16 %v1540
    %v1950 = vunpack.c.h.b16 %v1540
    %v1951 = vunpack.c.l.b16 %v1541
    %v1952 = vunpack.c.h.b16 %v1541
    %v1953 = vunpack.c.l.b16 %v1542
    %v1954 = vunpack.c.h.b16 %v1542
    %v1955 = vunpack.c.l.b16 %v1543
    %v1956 = vunpack.c.h.b16 %v1543
    %v1957 = vunpack.c.l.b16 %v1544
    %v1958 = vunpack.c.h.b16 %v1544
    %v1959 = vunpack.c.l.b16 %v1545
    %v1960 = vunpack.c.h.b16 %v1545
    %v1961 = vunpack.c.l.b16 %v1546
    %v1962 = vunpack.c.h.b16 %v1546
    %v1963 = vunpack.c.l.b16 %v1547
    %v1964 = vunpack.c.h.b16 %v1547
    %v1965 = vunpack.c.l.b16 %v1548
    %v1966 = vunpack.c.h.b16 %v1548
    %v1967 = vunpack.c.l.b16 %v1549
    %v1968 = vunpack.c.h.b16 %v1549
    %v1969 = vunpack.c.l.b16 %v1550
    %v1970 = vunpack.c.h.b16 %v1550
    %v1971 = vpack.c.b16 %v1719, %v1715
    %v1972 = vpack.c.b16 %v1720, %v1716
    %v1973 = vpack.c.b16 %v1721, %v1717
    %v1974 = vpack.c.b16 %v1722, %v1718
    %v1975 = vpack.c.b16 %v1727, %v1723
    %v1976 = vpack.c.b16 %v1728, %v1724
    %v1977 = vpack.c.b16 %v1729, %v1725
    %v1978 = vpack.c.b16 %v1730, %v1726
    %v1979 = vpack.c.b16 %v1735, %v1731
    %v1980 = vpack.c.b16 %v1736, %v1732
    %v1981 = vpack.c.b16 %v1737, %v1733
    %v1982 = vpack.c.b16 %v1738, %v1734
    %v1983 = vpack.c.b16 %v1743, %v1739
    %v1984 = vpack.c.b16 %v1744, %v1740
    %v1985 = vpack.c.b16 %v1745, %v1741
    %v1986 = vpack.c.b16 %v1746, %v1742
    %v1987 = vpack.c.b16 %v1751, %v1747
    %v1988 = vpack.c.b16 %v1752, %v1748
    %v1989 = vpack.c.b16 %v1753, %v1749
    %v1990 = vpack.c.b16 %v1754, %v1750
    %v1991 = vpack.c.b16 %v1759, %v1755
    %v1992 = vpack.c.b16 %v1760, %v1756
    %v1993 = vpack.c.b16 %v1761, %v1757
    %v1994 = vpack.c.b16 %v1762, %v1758
    %v1995 = vpack.c.b16 %v1767, %v1763
    %v1996 = vpack.c.b16 %v1768, %v1764
    %v1997 = vpack.c.b16 %v1769, %v1765
    %v1998 = vpack.c.b16 %v1770, %v1766
    %v1999 = vpack.c.b16 %v1775, %v1771
    %v2000 = vpack.c.b16 %v1776, %v1772
    %v2001 = vpack.c.b16 %v1777, %v1773
    %v2002 = vpack.c.b16 %v1778, %v1774
    %v2003 = vpack.c.b16 %v1783, %v1779
    %v2004 = vpack.c.b16 %v1784, %v1780
    %v2005 = vpack.c.b16 %v1785, %v1781
    %v2006 = vpack.c.b16 %v1786, %v1782
    %v2007 = vpack.c.b16 %v1791, %v1787
    %v2008 = vpack.c.b16 %v1792, %v1788
    %v2009 = vpack.c.b16 %v1793, %v1789
    %v2010 = vpack.c.b16 %v1794, %v1790
    %v2011 = vpack.c.b16 %v1799, %v1795
    %v2012 = vpack.c.b16 %v1800, %v1796
    %v2013 = vpack.c.b16 %v1801, %v1797
    %v2014 = vpack.c.b16 %v1802, %v1798
    %v2015 = vpack.c.b16 %v1807, %v1803
    %v2016 = vpack.c.b16 %v1808, %v1804
    %v2017 = vpack.c.b16 %v1809, %v1805
    %v2018 = vpack.c.b16 %v1810, %v1806
    %v2019 = vpack.c.b16 %v1815, %v1811
    %v2020 = vpack.c.b16 %v1816, %v1812
    %v2021 = vpack.c.b16 %v1817, %v1813
    %v2022 = vpack.c.b16 %v1818, %v1814
    %v2023 = vpack.c.b16 %v1823, %v1819
    %v2024 = vpack.c.b16 %v1824, %v1820
    %v2025 = vpack.c.b16 %v1825, %v1821
    %v2026 = vpack.c.b16 %v1826, %v1822
    %v2027 = vpack.c.b16 %v1831, %v1827
    %v2028 = vpack.c.b16 %v1832, %v1828
    %v2029 = vpack.c.b16 %v1833, %v1829
    %v2030 = vpack.c.b16 %v1834, %v1830
    %v2031 = vpack.c.b16 %v1839, %v1835
    %v2032 = vpack.c.b16 %v1840, %v1836
    %v2033 = vpack.c.b16 %v1841, %v1837
    %v2034 = vpack.c.b16 %v1842, %v1838
    %v2035 = vpack.c.b16 %v1847, %v1843
    %v2036 = vpack.c.b16 %v1848, %v1844
    %v2037 = vpack.c.b16 %v1849, %v1845
    %v2038 = vpack.c.b16 %v1850, %v1846
    %v2039 = vpack.c.b16 %v1855, %v1851
    %v2040 = vpack.c.b16 %v1856, %v1852
    %v2041 = vpack.c.b16 %v1857, %v1853
    %v2042 = vpack.c.b16 %v1858, %v1854
    %v2043 = vpack.c.b16 %v1863, %v1859
    %v2044 = vpack.c.b16 %v1864, %v1860
    %v2045 = vpack.c.b16 %v1865, %v1861
    %v2046 = vpack.c.b16 %v1866, %v1862
    %v2047 = vpack.c.b16 %v1871, %v1867
    %v2048 = vpack.c.b16 %v1872, %v1868
    %v2049 = vpack.c.b16 %v1873, %v1869
    %v2050 = vpack.c.b16 %v1874, %v1870
    %v2051 = vpack.c.b16 %v1879, %v1875
    %v2052 = vpack.c.b16 %v1880, %v1876
    %v2053 = vpack.c.b16 %v1881, %v1877
    %v2054 = vpack.c.b16 %v1882, %v1878
    %v2055 = vpack.c.b16 %v1887, %v1883
    %v2056 = vpack.c.b16 %v1888, %v1884
    %v2057 = vpack.c.b16 %v1889, %v1885
    %v2058 = vpack.c.b16 %v1890, %v1886
    %v2059 = vpack.c.b16 %v1895, %v1891
    %v2060 = vpack.c.b16 %v1896, %v1892
    %v2061 = vpack.c.b16 %v1897, %v1893
    %v2062 = vpack.c.b16 %v1898, %v1894
    %v2063 = vpack.c.b16 %v1903, %v1899
    %v2064 = vpack.c.b16 %v1904, %v1900
    %v2065 = vpack.c.b16 %v1905, %v1901
    %v2066 = vpack.c.b16 %v1906, %v1902
    %v2067 = vpack.c.b16 %v1911, %v1907
    %v2068 = vpack.c.b16 %v1912, %v1908
    %v2069 = vpack.c.b16 %v1913, %v1909
    %v2070 = vpack.c.b16 %v1914, %v1910
    %v2071 = vpack.c.b16 %v1919, %v1915
    %v2072 = vpack.c.b16 %v1920, %v1916
    %v2073 = vpack.c.b16 %v1921, %v1917
    %v2074 = vpack.c.b16 %v1922, %v1918
    %v2075 = vpack.c.b16 %v1927, %v1923
    %v2076 = vpack.c.b16 %v1928, %v1924
    %v2077 = vpack.c.b16 %v1929, %v1925
    %v2078 = vpack.c.b16 %v1930, %v1926
    %v2079 = vpack.c.b16 %v1935, %v1931
    %v2080 = vpack.c.b16 %v1936, %v1932
    %v2081 = vpack.c.b16 %v1937, %v1933
    %v2082 = vpack.c.b16 %v1938, %v1934
    %v2083 = vpack.c.b16 %v1943, %v1939
    %v2084 = vpack.c.b16 %v1944, %v1940
    %v2085 = vpack.c.b16 %v1945, %v1941
    %v2086 = vpack.c.b16 %v1946, %v1942
    %v2087 = vpack.c.b16 %v1951, %v1947
    %v2088 = vpack.c.b16 %v1952, %v1948
    %v2089 = vpack.c.b16 %v1953, %v1949
    %v2090 = vpack.c.b16 %v1954, %v1950
    %v2091 = vpack.c.b16 %v1959, %v1955
    %v2092 = vpack.c.b16 %v1960, %v1956
    %v2093 = vpack.c.b16 %v1961, %v1957
    %v2094 = vpack.c.b16 %v1962, %v1958
    %v2095 = vpack.c.b16 %v1967, %v1963
    %v2096 = vpack.c.b16 %v1968, %v1964
    %v2097 = vpack.c.b16 %v1969, %v1965
    %v2098 = vpack.c.b16 %v1970, %v1966
    %2227 = vmatprep.subr.bf16.mxu0 %v1972
    %2228 = vmatpush1.bf16.msra.mxu0 %v1971
    %2229 = vmatprep.subr.bf16.mxu0 %v1976
    %2230 = vmatpush1.bf16.msra.mxu0 %v1975
    %2231 = vmatprep.subr.bf16.mxu0 %v1980
    %2232 = vmatpush1.bf16.msra.mxu0 %v1979
    %2233 = vmatprep.subr.bf16.mxu0 %v1984
    %2234 = vmatpush1.bf16.msra.mxu0 %v1983
    %2235 = vmatprep.subr.bf16.mxu0 %v1988
    %2236 = vmatpush1.bf16.msra.mxu0 %v1987
    %2237 = vmatprep.subr.bf16.mxu0 %v1992
    %2238 = vmatpush1.bf16.msra.mxu0 %v1991
    %2239 = vmatprep.subr.bf16.mxu0 %v1996
    %2240 = vmatpush1.bf16.msra.mxu0 %v1995
    %2241 = vmatprep.subr.bf16.mxu0 %v2000
    %2242 = vmatpush1.bf16.msra.mxu0 %v1999
    %2243 = vmatprep.subr.bf16.mxu0 %v2004
    %2244 = vmatpush1.bf16.msra.mxu0 %v2003
    %2245 = vmatprep.subr.bf16.mxu0 %v2008
    %2246 = vmatpush1.bf16.msra.mxu0 %v2007
    %2247 = vmatprep.subr.bf16.mxu0 %v2012
    %2248 = vmatpush1.bf16.msra.mxu0 %v2011
    %2249 = vmatprep.subr.bf16.mxu0 %v2016
    %2250 = vmatpush1.bf16.msra.mxu0 %v2015
    %2251 = vmatprep.subr.bf16.mxu0 %v2020
    %2252 = vmatpush1.bf16.msra.mxu0 %v2019
    %2253 = vmatprep.subr.bf16.mxu0 %v2024
    %2254 = vmatpush1.bf16.msra.mxu0 %v2023
    %2255 = vmatprep.subr.bf16.mxu0 %v2028
    %2256 = vmatpush1.bf16.msra.mxu0 %v2027
    %2257 = vmatprep.subr.bf16.mxu0 %v2032
    %2258 = vmatpush1.bf16.msra.mxu0 %v2031
    %2259 = vmatprep.mubr.bf16.mxu0 %v444
    %2260 = vmatmul.mubr.bf16.gmra.mrb[0].mxu0 %v443
    %v2261 = vpop.f32.mrb[0].mxu0
    %v2262 = vadd.f32 %v1574, %v2261
    %v2263 = vpop.f32.mrb[0].mxu0
    %v2264 = vadd.f32 %v1578, %v2263
    %v2265 = vpop.f32.mrb[0].mxu0
    %v2266 = vpop.f32.mrb[0].mxu0
    %2267 = vdwg.mxu0
    %2268 = vmatprep.subr.bf16.mxu0 %v2036
    %2269 = vmatpush1.bf16.msra.mxu0 %v2035
    %2270 = vmatprep.subr.bf16.mxu0 %v2040
    %2271 = vmatpush1.bf16.msra.mxu0 %v2039
    %2272 = vmatprep.subr.bf16.mxu0 %v2044
    %2273 = vmatpush1.bf16.msra.mxu0 %v2043
    %2274 = vmatprep.subr.bf16.mxu0 %v2048
    %2275 = vmatpush1.bf16.msra.mxu0 %v2047
    %2276 = vmatprep.subr.bf16.mxu0 %v2052
    %2277 = vmatpush1.bf16.msra.mxu0 %v2051
    %2278 = vmatprep.subr.bf16.mxu0 %v2056
    %2279 = vmatpush1.bf16.msra.mxu0 %v2055
    %2280 = vmatprep.subr.bf16.mxu0 %v2060
    %2281 = vmatpush1.bf16.msra.mxu0 %v2059
    %2282 = vmatprep.subr.bf16.mxu0 %v2064
    %2283 = vmatpush1.bf16.msra.mxu0 %v2063
    %2284 = vmatprep.subr.bf16.mxu0 %v2068
    %2285 = vmatpush1.bf16.msra.mxu0 %v2067
    %2286 = vmatprep.subr.bf16.mxu0 %v2072
    %2287 = vmatpush1.bf16.msra.mxu0 %v2071
    %2288 = vmatprep.subr.bf16.mxu0 %v2076
    %2289 = vmatpush1.bf16.msra.mxu0 %v2075
    %2290 = vmatprep.subr.bf16.mxu0 %v2080
    %2291 = vmatpush1.bf16.msra.mxu0 %v2079
    %2292 = vmatprep.subr.bf16.mxu0 %v2084
    %2293 = vmatpush1.bf16.msra.mxu0 %v2083
    %2294 = vmatprep.subr.bf16.mxu0 %v2088
    %2295 = vmatpush1.bf16.msra.mxu0 %v2087
    %2296 = vmatprep.subr.bf16.mxu0 %v2092
    %2297 = vmatpush1.bf16.msra.mxu0 %v2091
    %2298 = vmatprep.subr.bf16.mxu0 %v2096
    %2299 = vmatpush1.bf16.msra.mxu0 %v2095
    %2300 = vmatprep.mubr.bf16.mxu0 %v446
    %2301 = vmatmul.mubr.bf16.gmra.mrb[0].mxu0 %v445
    %v2302 = vpop.f32.mrb[0].mxu0
    %v2303 = vadd.f32 %v2262, %v2302
    %v2304 = vpop.f32.mrb[0].mxu0
    %v2305 = vadd.f32 %v2264, %v2304
    %v2306 = vpop.f32.mrb[0].mxu0
    %v2307 = vpop.f32.mrb[0].mxu0
    %2308 = vdwg.mxu0
    %2309 = vmatprep.subr.bf16.mxu0 %v1974
    %2310 = vmatpush1.bf16.msra.mxu0 %v1973
    %2311 = vmatprep.subr.bf16.mxu0 %v1978
    %2312 = vmatpush1.bf16.msra.mxu0 %v1977
    %2313 = vmatprep.subr.bf16.mxu0 %v1982
    %2314 = vmatpush1.bf16.msra.mxu0 %v1981
    %2315 = vmatprep.subr.bf16.mxu0 %v1986
    %2316 = vmatpush1.bf16.msra.mxu0 %v1985
    %2317 = vmatprep.subr.bf16.mxu0 %v1990
    %2318 = vmatpush1.bf16.msra.mxu0 %v1989
    %2319 = vmatprep.subr.bf16.mxu0 %v1994
    %2320 = vmatpush1.bf16.msra.mxu0 %v1993
    %2321 = vmatprep.subr.bf16.mxu0 %v1998
    %2322 = vmatpush1.bf16.msra.mxu0 %v1997
    %2323 = vmatprep.subr.bf16.mxu0 %v2002
    %2324 = vmatpush1.bf16.msra.mxu0 %v2001
    %2325 = vmatprep.subr.bf16.mxu0 %v2006
    %2326 = vmatpush1.bf16.msra.mxu0 %v2005
    %2327 = vmatprep.subr.bf16.mxu0 %v2010
    %2328 = vmatpush1.bf16.msra.mxu0 %v2009
    %2329 = vmatprep.subr.bf16.mxu0 %v2014
    %2330 = vmatpush1.bf16.msra.mxu0 %v2013
    %2331 = vmatprep.subr.bf16.mxu0 %v2018
    %2332 = vmatpush1.bf16.msra.mxu0 %v2017
    %2333 = vmatprep.subr.bf16.mxu0 %v2022
    %2334 = vmatpush1.bf16.msra.mxu0 %v2021
    %2335 = vmatprep.subr.bf16.mxu0 %v2026
    %2336 = vmatpush1.bf16.msra.mxu0 %v2025
    %2337 = vmatprep.subr.bf16.mxu0 %v2030
    %2338 = vmatpush1.bf16.msra.mxu0 %v2029
    %2339 = vmatprep.subr.bf16.mxu0 %v2034
    %2340 = vmatpush1.bf16.msra.mxu0 %v2033
    %2341 = vmatprep.mubr.bf16.mxu0 %v444
    %2342 = vmatmul.mubr.bf16.gmra.mrb[0].mxu0 %v443
    %v2343 = vpop.f32.mrb[0].mxu0
    %v2344 = vadd.f32 %v1582, %v2343
    %v2345 = vpop.f32.mrb[0].mxu0
    %v2346 = vadd.f32 %v1586, %v2345
    %v2347 = vpop.f32.mrb[0].mxu0
    %v2348 = vpop.f32.mrb[0].mxu0
    %2349 = vdwg.mxu0
    %2350 = vmatprep.subr.bf16.mxu0 %v2038
    %2351 = vmatpush1.bf16.msra.mxu0 %v2037
    %2352 = vmatprep.subr.bf16.mxu0 %v2042
    %2353 = vmatpush1.bf16.msra.mxu0 %v2041
    %2354 = vmatprep.subr.bf16.mxu0 %v2046
    %2355 = vmatpush1.bf16.msra.mxu0 %v2045
    %2356 = vmatprep.subr.bf16.mxu0 %v2050
    %2357 = vmatpush1.bf16.msra.mxu0 %v2049
    %2358 = vmatprep.subr.bf16.mxu0 %v2054
    %2359 = vmatpush1.bf16.msra.mxu0 %v2053
    %2360 = vmatprep.subr.bf16.mxu0 %v2058
    %2361 = vmatpush1.bf16.msra.mxu0 %v2057
    %2362 = vmatprep.subr.bf16.mxu0 %v2062
    %2363 = vmatpush1.bf16.msra.mxu0 %v2061
    %2364 = vmatprep.subr.bf16.mxu0 %v2066
    %2365 = vmatpush1.bf16.msra.mxu0 %v2065
    %2366 = vmatprep.subr.bf16.mxu0 %v2070
    %2367 = vmatpush1.bf16.msra.mxu0 %v2069
    %2368 = vmatprep.subr.bf16.mxu0 %v2074
    %2369 = vmatpush1.bf16.msra.mxu0 %v2073
    %2370 = vmatprep.subr.bf16.mxu0 %v2078
    %2371 = vmatpush1.bf16.msra.mxu0 %v2077
    %2372 = vmatprep.subr.bf16.mxu0 %v2082
    %2373 = vmatpush1.bf16.msra.mxu0 %v2081
    %2374 = vmatprep.subr.bf16.mxu0 %v2086
    %2375 = vmatpush1.bf16.msra.mxu0 %v2085
    %2376 = vmatprep.subr.bf16.mxu0 %v2090
    %2377 = vmatpush1.bf16.msra.mxu0 %v2089
    %2378 = vmatprep.subr.bf16.mxu0 %v2094
    %2379 = vmatpush1.bf16.msra.mxu0 %v2093
    %2380 = vmatprep.subr.bf16.mxu0 %v2098
    %2381 = vmatpush1.bf16.msra.mxu0 %v2097
    %2382 = vmatprep.mubr.bf16.mxu0 %v446
    %2383 = vmatmul.mubr.bf16.gmra.mrb[0].mxu0 %v445
    %v2384 = vpop.f32.mrb[0].mxu0
    %v2385 = vadd.f32 %v2344, %v2384
    %v2386 = vpop.f32.mrb[0].mxu0
    %v2387 = vadd.f32 %v2346, %v2386
    %v2388 = vpop.f32.mrb[0].mxu0
    %v2389 = vpop.f32.mrb[0].mxu0
    %2390 = vdwg.mxu0
    %v2391 = vmax.f32 %v2303, 0.0
    %v2392 = vmax.f32 %v2305, 0.0
    %v2393 = vmax.f32 %v2385, 0.0
    %v2394 = vmax.f32 %v2387, 0.0
    %v2395 = vpack.c.bf16 %v2391, %v2391
    %v2396 = vpack.c.bf16 %v2392, %v2392
    %v2397 = vpack.c.bf16 %v2393, %v2393
    %v2398 = vpack.c.bf16 %v2394, %v2394
    %v2399 = vld [vmem:[#allocation7] sm:$0xf]
    %v2400 = vld [vmem:[#allocation7 + $0x4] sm:$0xf]
    %v2401 = vld [vmem:[#allocation7 + $0x8] sm:$0xf]
    %v2402 = vld [vmem:[#allocation7 + $0xc] sm:$0xf]
    %v2403 = vld [vmem:[#allocation7 + $0x10] sm:$0xf]
    %v2404 = vld [vmem:[#allocation7 + $0x14] sm:$0xf]
    %v2405 = vld [vmem:[#allocation7 + $0x18] sm:$0xf]
    %v2406 = vld [vmem:[#allocation7 + $0x1c] sm:$0xf]
    %v2407 = vld [vmem:[#allocation7 + $0x20] sm:$0xf]
    %v2408 = vld [vmem:[#allocation7 + $0x24] sm:$0xf]
    %v2409 = vld [vmem:[#allocation7 + $0x28] sm:$0xf]
    %v2410 = vld [vmem:[#allocation7 + $0x2c] sm:$0xf]
    %v2411 = vld [vmem:[#allocation7 + $0x30] sm:$0xf]
    %v2412 = vld [vmem:[#allocation7 + $0x34] sm:$0xf]
    %v2413 = vld [vmem:[#allocation7 + $0x38] sm:$0xf]
    %v2414 = vld [vmem:[#allocation7 + $0x3c] sm:$0xf]
    %v2415 = vld [vmem:[#allocation7 + $0x40] sm:$0xf]
    %v2416 = vld [vmem:[#allocation7 + $0x44] sm:$0xf]
    %v2417 = vld [vmem:[#allocation7 + $0x48] sm:$0xf]
    %v2418 = vld [vmem:[#allocation7 + $0x4c] sm:$0xf]
    %v2419 = vld [vmem:[#allocation7 + $0x50] sm:$0xf]
    %v2420 = vld [vmem:[#allocation7 + $0x54] sm:$0xf]
    %v2421 = vld [vmem:[#allocation7 + $0x58] sm:$0xf]
    %v2422 = vld [vmem:[#allocation7 + $0x5c] sm:$0xf]
    %v2423 = vld [vmem:[#allocation7 + $0x60] sm:$0xf]
    %v2424 = vld [vmem:[#allocation7 + $0x64] sm:$0xf]
    %v2425 = vld [vmem:[#allocation7 + $0x68] sm:$0xf]
    %v2426 = vld [vmem:[#allocation7 + $0x6c] sm:$0xf]
    %v2427 = vld [vmem:[#allocation7 + $0x70] sm:$0xf]
    %v2428 = vld [vmem:[#allocation7 + $0x74] sm:$0xf]
    %v2429 = vld [vmem:[#allocation7 + $0x78] sm:$0xf]
    %v2430 = vld [vmem:[#allocation7 + $0x7c] sm:$0xf]
    %v2431 = vld [vmem:[#allocation7 + $0x80] sm:$0xf]
    %v2432 = vld [vmem:[#allocation7 + $0x84] sm:$0xf]
    %v2433 = vld [vmem:[#allocation7 + $0x88] sm:$0xf]
    %v2434 = vld [vmem:[#allocation7 + $0x8c] sm:$0xf]
    %v2435 = vld [vmem:[#allocation7 + $0x90] sm:$0xf]
    %v2436 = vld [vmem:[#allocation7 + $0x94] sm:$0xf]
    %v2437 = vld [vmem:[#allocation7 + $0x98] sm:$0xf]
    %v2438 = vld [vmem:[#allocation7 + $0x9c] sm:$0xf]
    %v2439 = vld [vmem:[#allocation7 + $0xa0] sm:$0xf]
    %v2440 = vld [vmem:[#allocation7 + $0xa4] sm:$0xf]
    %v2441 = vld [vmem:[#allocation7 + $0xa8] sm:$0xf]
    %v2442 = vld [vmem:[#allocation7 + $0xac] sm:$0xf]
    %v2443 = vld [vmem:[#allocation7 + $0xb0] sm:$0xf]
    %v2444 = vld [vmem:[#allocation7 + $0xb4] sm:$0xf]
    %v2445 = vld [vmem:[#allocation7 + $0xb8] sm:$0xf]
    %v2446 = vld [vmem:[#allocation7 + $0xbc] sm:$0xf]
    %v2447 = vld [vmem:[#allocation7 + $0xc0] sm:$0xf]
    %v2448 = vld [vmem:[#allocation7 + $0xc4] sm:$0xf]
    %v2449 = vld [vmem:[#allocation7 + $0xc8] sm:$0xf]
    %v2450 = vld [vmem:[#allocation7 + $0xcc] sm:$0xf]
    %v2451 = vld [vmem:[#allocation7 + $0xd0] sm:$0xf]
    %v2452 = vld [vmem:[#allocation7 + $0xd4] sm:$0xf]
    %v2453 = vld [vmem:[#allocation7 + $0xd8] sm:$0xf]
    %v2454 = vld [vmem:[#allocation7 + $0xdc] sm:$0xf]
    %v2455 = vld [vmem:[#allocation7 + $0xe0] sm:$0xf]
    %v2456 = vld [vmem:[#allocation7 + $0xe4] sm:$0xf]
    %v2457 = vld [vmem:[#allocation7 + $0xe8] sm:$0xf]
    %v2458 = vld [vmem:[#allocation7 + $0xec] sm:$0xf]
    %v2459 = vld [vmem:[#allocation7 + $0xf0] sm:$0xf]
    %v2460 = vld [vmem:[#allocation7 + $0xf4] sm:$0xf]
    %v2461 = vld [vmem:[#allocation7 + $0xf8] sm:$0xf]
    %v2462 = vld [vmem:[#allocation7 + $0xfc] sm:$0xf]
    %v2463 = vld [vmem:[#allocation7 + $0x100] sm:$0xf]
    %v2464 = vld [vmem:[#allocation7 + $0x104] sm:$0xf]
    %v2465 = vld [vmem:[#allocation7 + $0x108] sm:$0xf]
    %v2466 = vld [vmem:[#allocation7 + $0x10c] sm:$0xf]
    %v2467 = vld [vmem:[#allocation7 + $0x110] sm:$0xf]
    %v2468 = vld [vmem:[#allocation7 + $0x114] sm:$0xf]
    %v2469 = vld [vmem:[#allocation7 + $0x118] sm:$0xf]
    %v2470 = vld [vmem:[#allocation7 + $0x11c] sm:$0xf]
    %v2471 = vld [vmem:[#allocation7 + $0x120] sm:$0xf]
    %v2472 = vld [vmem:[#allocation7 + $0x124] sm:$0xf]
    %v2473 = vld [vmem:[#allocation7 + $0x128] sm:$0xf]
    %v2474 = vld [vmem:[#allocation7 + $0x12c] sm:$0xf]
    %v2475 = vld [vmem:[#allocation7 + $0x130] sm:$0xf]
    %v2476 = vld [vmem:[#allocation7 + $0x134] sm:$0xf]
    %v2477 = vld [vmem:[#allocation7 + $0x138] sm:$0xf]
    %v2478 = vld [vmem:[#allocation7 + $0x13c] sm:$0xf]
    %v2479 = vld [vmem:[#allocation7 + $0x140] sm:$0xf]
    %v2480 = vld [vmem:[#allocation7 + $0x144] sm:$0xf]
    %v2481 = vld [vmem:[#allocation7 + $0x148] sm:$0xf]
    %v2482 = vld [vmem:[#allocation7 + $0x14c] sm:$0xf]
    %v2483 = vld [vmem:[#allocation7 + $0x150] sm:$0xf]
    %v2484 = vld [vmem:[#allocation7 + $0x154] sm:$0xf]
    %v2485 = vld [vmem:[#allocation7 + $0x158] sm:$0xf]
    %v2486 = vld [vmem:[#allocation7 + $0x15c] sm:$0xf]
    %v2487 = vld [vmem:[#allocation7 + $0x160] sm:$0xf]
    %v2488 = vld [vmem:[#allocation7 + $0x164] sm:$0xf]
    %v2489 = vld [vmem:[#allocation7 + $0x168] sm:$0xf]
    %v2490 = vld [vmem:[#allocation7 + $0x16c] sm:$0xf]
    %v2491 = vld [vmem:[#allocation7 + $0x170] sm:$0xf]
    %v2492 = vld [vmem:[#allocation7 + $0x174] sm:$0xf]
    %v2493 = vld [vmem:[#allocation7 + $0x178] sm:$0xf]
    %v2494 = vld [vmem:[#allocation7 + $0x17c] sm:$0xf]
    %v2495 = vld [vmem:[#allocation7 + $0x180] sm:$0xf]
    %v2496 = vld [vmem:[#allocation7 + $0x184] sm:$0xf]
    %v2497 = vld [vmem:[#allocation7 + $0x188] sm:$0xf]
    %v2498 = vld [vmem:[#allocation7 + $0x18c] sm:$0xf]
    %v2499 = vld [vmem:[#allocation7 + $0x190] sm:$0xf]
    %v2500 = vld [vmem:[#allocation7 + $0x194] sm:$0xf]
    %v2501 = vld [vmem:[#allocation7 + $0x198] sm:$0xf]
    %v2502 = vld [vmem:[#allocation7 + $0x19c] sm:$0xf]
    %v2503 = vld [vmem:[#allocation7 + $0x1a0] sm:$0xf]
    %v2504 = vld [vmem:[#allocation7 + $0x1a4] sm:$0xf]
    %v2505 = vld [vmem:[#allocation7 + $0x1a8] sm:$0xf]
    %v2506 = vld [vmem:[#allocation7 + $0x1ac] sm:$0xf]
    %v2507 = vld [vmem:[#allocation7 + $0x1b0] sm:$0xf]
    %v2508 = vld [vmem:[#allocation7 + $0x1b4] sm:$0xf]
    %v2509 = vld [vmem:[#allocation7 + $0x1b8] sm:$0xf]
    %v2510 = vld [vmem:[#allocation7 + $0x1bc] sm:$0xf]
    %v2511 = vld [vmem:[#allocation7 + $0x1c0] sm:$0xf]
    %v2512 = vld [vmem:[#allocation7 + $0x1c4] sm:$0xf]
    %v2513 = vld [vmem:[#allocation7 + $0x1c8] sm:$0xf]
    %v2514 = vld [vmem:[#allocation7 + $0x1cc] sm:$0xf]
    %v2515 = vld [vmem:[#allocation7 + $0x1d0] sm:$0xf]
    %v2516 = vld [vmem:[#allocation7 + $0x1d4] sm:$0xf]
    %v2517 = vld [vmem:[#allocation7 + $0x1d8] sm:$0xf]
    %v2518 = vld [vmem:[#allocation7 + $0x1dc] sm:$0xf]
    %v2519 = vld [vmem:[#allocation7 + $0x1e0] sm:$0xf]
    %v2520 = vld [vmem:[#allocation7 + $0x1e4] sm:$0xf]
    %v2521 = vld [vmem:[#allocation7 + $0x1e8] sm:$0xf]
    %v2522 = vld [vmem:[#allocation7 + $0x1ec] sm:$0xf]
    %v2523 = vld [vmem:[#allocation7 + $0x1f0] sm:$0xf]
    %v2524 = vld [vmem:[#allocation7 + $0x1f4] sm:$0xf]
    %v2525 = vld [vmem:[#allocation7 + $0x1f8] sm:$0xf]
    %v2526 = vld [vmem:[#allocation7 + $0x1fc] sm:$0xf]
    %v2591 = vunpack.c.l.b16 %v2463
    %v2592 = vunpack.c.l.b16 %v2464
    %v2593 = vunpack.c.l.b16 %v2465
    %v2594 = vunpack.c.l.b16 %v2466
    %v2595 = vunpack.c.l.b16 %v2467
    %v2596 = vunpack.c.l.b16 %v2468
    %v2597 = vunpack.c.l.b16 %v2469
    %v2598 = vunpack.c.l.b16 %v2470
    %v2599 = vunpack.c.l.b16 %v2471
    %v2600 = vunpack.c.l.b16 %v2472
    %v2601 = vunpack.c.l.b16 %v2473
    %v2602 = vunpack.c.l.b16 %v2474
    %v2603 = vunpack.c.l.b16 %v2475
    %v2604 = vunpack.c.l.b16 %v2476
    %v2605 = vunpack.c.l.b16 %v2477
    %v2606 = vunpack.c.l.b16 %v2478
    %v2607 = vunpack.c.l.b16 %v2479
    %v2608 = vunpack.c.l.b16 %v2480
    %v2609 = vunpack.c.l.b16 %v2481
    %v2610 = vunpack.c.l.b16 %v2482
    %v2611 = vunpack.c.l.b16 %v2483
    %v2612 = vunpack.c.l.b16 %v2484
    %v2613 = vunpack.c.l.b16 %v2485
    %v2614 = vunpack.c.l.b16 %v2486
    %v2615 = vunpack.c.l.b16 %v2487
    %v2616 = vunpack.c.l.b16 %v2488
    %v2617 = vunpack.c.l.b16 %v2489
    %v2618 = vunpack.c.l.b16 %v2490
    %v2619 = vunpack.c.l.b16 %v2491
    %v2620 = vunpack.c.l.b16 %v2492
    %v2621 = vunpack.c.l.b16 %v2493
    %v2622 = vunpack.c.l.b16 %v2494
    %v2623 = vunpack.c.l.b16 %v2495
    %v2624 = vunpack.c.l.b16 %v2496
    %v2625 = vunpack.c.l.b16 %v2497
    %v2626 = vunpack.c.l.b16 %v2498
    %v2627 = vunpack.c.l.b16 %v2499
    %v2628 = vunpack.c.l.b16 %v2500
    %v2629 = vunpack.c.l.b16 %v2501
    %v2630 = vunpack.c.l.b16 %v2502
    %v2631 = vunpack.c.l.b16 %v2503
    %v2632 = vunpack.c.l.b16 %v2504
    %v2633 = vunpack.c.l.b16 %v2505
    %v2634 = vunpack.c.l.b16 %v2506
    %v2635 = vunpack.c.l.b16 %v2507
    %v2636 = vunpack.c.l.b16 %v2508
    %v2637 = vunpack.c.l.b16 %v2509
    %v2638 = vunpack.c.l.b16 %v2510
    %v2639 = vunpack.c.l.b16 %v2511
    %v2640 = vunpack.c.l.b16 %v2512
    %v2641 = vunpack.c.l.b16 %v2513
    %v2642 = vunpack.c.l.b16 %v2514
    %v2643 = vunpack.c.l.b16 %v2515
    %v2644 = vunpack.c.l.b16 %v2516
    %v2645 = vunpack.c.l.b16 %v2517
    %v2646 = vunpack.c.l.b16 %v2518
    %v2647 = vunpack.c.l.b16 %v2519
    %v2648 = vunpack.c.l.b16 %v2520
    %v2649 = vunpack.c.l.b16 %v2521
    %v2650 = vunpack.c.l.b16 %v2522
    %v2651 = vunpack.c.l.b16 %v2523
    %v2652 = vunpack.c.l.b16 %v2524
    %v2653 = vunpack.c.l.b16 %v2525
    %v2654 = vunpack.c.l.b16 %v2526
    %v2655 = vpack.c.b16 %v2592, %v2591
    %v2656 = vpack.c.b16 %v2594, %v2593
    %v2657 = vpack.c.b16 %v2596, %v2595
    %v2658 = vpack.c.b16 %v2598, %v2597
    %v2659 = vpack.c.b16 %v2600, %v2599
    %v2660 = vpack.c.b16 %v2602, %v2601
    %v2661 = vpack.c.b16 %v2604, %v2603
    %v2662 = vpack.c.b16 %v2606, %v2605
    %v2663 = vpack.c.b16 %v2608, %v2607
    %v2664 = vpack.c.b16 %v2610, %v2609
    %v2665 = vpack.c.b16 %v2612, %v2611
    %v2666 = vpack.c.b16 %v2614, %v2613
    %v2667 = vpack.c.b16 %v2616, %v2615
    %v2668 = vpack.c.b16 %v2618, %v2617
    %v2669 = vpack.c.b16 %v2620, %v2619
    %v2670 = vpack.c.b16 %v2622, %v2621
    %v2671 = vpack.c.b16 %v2624, %v2623
    %v2672 = vpack.c.b16 %v2626, %v2625
    %v2673 = vpack.c.b16 %v2628, %v2627
    %v2674 = vpack.c.b16 %v2630, %v2629
    %v2675 = vpack.c.b16 %v2632, %v2631
    %v2676 = vpack.c.b16 %v2634, %v2633
    %v2677 = vpack.c.b16 %v2636, %v2635
    %v2678 = vpack.c.b16 %v2638, %v2637
    %v2679 = vpack.c.b16 %v2640, %v2639
    %v2680 = vpack.c.b16 %v2642, %v2641
    %v2681 = vpack.c.b16 %v2644, %v2643
    %v2682 = vpack.c.b16 %v2646, %v2645
    %v2683 = vpack.c.b16 %v2648, %v2647
    %v2684 = vpack.c.b16 %v2650, %v2649
    %v2685 = vpack.c.b16 %v2652, %v2651
    %v2686 = vpack.c.b16 %v2654, %v2653
    %2719 = vmatprep.subr.bf16.mxu0 0
    %2720 = vmatpush1.bf16.msra.mxu0 %v2655
    %2721 = vmatprep.subr.bf16.mxu0 0
    %2722 = vmatpush1.bf16.msra.mxu0 %v2656
    %2723 = vmatprep.subr.bf16.mxu0 0
    %2724 = vmatpush1.bf16.msra.mxu0 %v2657
    %2725 = vmatprep.subr.bf16.mxu0 0
    %2726 = vmatpush1.bf16.msra.mxu0 %v2658
    %2727 = vmatprep.subr.bf16.mxu0 0
    %2728 = vmatpush1.bf16.msra.mxu0 %v2659
    %2729 = vmatprep.subr.bf16.mxu0 0
    %2730 = vmatpush1.bf16.msra.mxu0 %v2660
    %2731 = vmatprep.subr.bf16.mxu0 0
    %2732 = vmatpush1.bf16.msra.mxu0 %v2661
    %2733 = vmatprep.subr.bf16.mxu0 0
    %2734 = vmatpush1.bf16.msra.mxu0 %v2662
    %2735 = vmatprep.subr.bf16.mxu0 0
    %2736 = vmatpush1.bf16.msra.mxu0 %v2663
    %2737 = vmatprep.subr.bf16.mxu0 0
    %2738 = vmatpush1.bf16.msra.mxu0 %v2664
    %2739 = vmatprep.subr.bf16.mxu0 0
    %2740 = vmatpush1.bf16.msra.mxu0 %v2665
    %2741 = vmatprep.subr.bf16.mxu0 0
    %2742 = vmatpush1.bf16.msra.mxu0 %v2666
    %2743 = vmatprep.subr.bf16.mxu0 0
    %2744 = vmatpush1.bf16.msra.mxu0 %v2667
    %2745 = vmatprep.subr.bf16.mxu0 0
    %2746 = vmatpush1.bf16.msra.mxu0 %v2668
    %2747 = vmatprep.subr.bf16.mxu0 0
    %2748 = vmatpush1.bf16.msra.mxu0 %v2669
    %2749 = vmatprep.subr.bf16.mxu0 0
    %2750 = vmatpush1.bf16.msra.mxu0 %v2670
    %2751 = vmatprep.mubr.bf16.mxu0 %v2396
    %2752 = vmatmul.mubr.bf16.gmra.mrb[0].mxu0 %v2395
    %v2753 = vpop.f32.mrb[0].mxu0
    %v2754 = vadd.f32 0.0, %v2753
    %v2755 = vpop.f32.mrb[0].mxu0
    %v2756 = vpop.f32.mrb[0].mxu0
    %v2757 = vpop.f32.mrb[0].mxu0
    %2758 = vdwg.mxu0
    %2759 = vmatprep.subr.bf16.mxu0 0
    %2760 = vmatpush1.bf16.msra.mxu0 %v2671
    %2761 = vmatprep.subr.bf16.mxu0 0
    %2762 = vmatpush1.bf16.msra.mxu0 %v2672
    %2763 = vmatprep.subr.bf16.mxu0 0
    %2764 = vmatpush1.bf16.msra.mxu0 %v2673
    %2765 = vmatprep.subr.bf16.mxu0 0
    %2766 = vmatpush1.bf16.msra.mxu0 %v2674
    %2767 = vmatprep.subr.bf16.mxu0 0
    %2768 = vmatpush1.bf16.msra.mxu0 %v2675
    %2769 = vmatprep.subr.bf16.mxu0 0
    %2770 = vmatpush1.bf16.msra.mxu0 %v2676
    %2771 = vmatprep.subr.bf16.mxu0 0
    %2772 = vmatpush1.bf16.msra.mxu0 %v2677
    %2773 = vmatprep.subr.bf16.mxu0 0
    %2774 = vmatpush1.bf16.msra.mxu0 %v2678
    %2775 = vmatprep.subr.bf16.mxu0 0
    %2776 = vmatpush1.bf16.msra.mxu0 %v2679
    %2777 = vmatprep.subr.bf16.mxu0 0
    %2778 = vmatpush1.bf16.msra.mxu0 %v2680
    %2779 = vmatprep.subr.bf16.mxu0 0
    %2780 = vmatpush1.bf16.msra.mxu0 %v2681
    %2781 = vmatprep.subr.bf16.mxu0 0
    %2782 = vmatpush1.bf16.msra.mxu0 %v2682
    %2783 = vmatprep.subr.bf16.mxu0 0
    %2784 = vmatpush1.bf16.msra.mxu0 %v2683
    %2785 = vmatprep.subr.bf16.mxu0 0
    %2786 = vmatpush1.bf16.msra.mxu0 %v2684
    %2787 = vmatprep.subr.bf16.mxu0 0
    %2788 = vmatpush1.bf16.msra.mxu0 %v2685
    %2789 = vmatprep.subr.bf16.mxu0 0
    %2790 = vmatpush1.bf16.msra.mxu0 %v2686
    %2791 = vmatprep.mubr.bf16.mxu0 %v2398
    %2792 = vmatmul.mubr.bf16.gmra.mrb[0].mxu0 %v2397
    %v2793 = vpop.f32.mrb[0].mxu0
    %v2794 = vadd.f32 %v2754, %v2793
    %v2795 = vpop.f32.mrb[0].mxu0
    %v2796 = vpop.f32.mrb[0].mxu0
    %v2797 = vpop.f32.mrb[0].mxu0
    %2798 = vdwg.mxu0
    %v2863 = vunpack.c.l.b16 %v2399
    %v2864 = vunpack.c.l.b16 %v2400
    %v2865 = vunpack.c.l.b16 %v2401
    %v2866 = vunpack.c.l.b16 %v2402
    %v2867 = vunpack.c.l.b16 %v2403
    %v2868 = vunpack.c.l.b16 %v2404
    %v2869 = vunpack.c.l.b16 %v2405
    %v2870 = vunpack.c.l.b16 %v2406
    %v2871 = vunpack.c.l.b16 %v2407
    %v2872 = vunpack.c.l.b16 %v2408
    %v2873 = vunpack.c.l.b16 %v2409
    %v2874 = vunpack.c.l.b16 %v2410
    %v2875 = vunpack.c.l.b16 %v2411
    %v2876 = vunpack.c.l.b16 %v2412
    %v2877 = vunpack.c.l.b16 %v2413
    %v2878 = vunpack.c.l.b16 %v2414
    %v2879 = vunpack.c.l.b16 %v2415
    %v2880 = vunpack.c.l.b16 %v2416
    %v2881 = vunpack.c.l.b16 %v2417
    %v2882 = vunpack.c.l.b16 %v2418
    %v2883 = vunpack.c.l.b16 %v2419
    %v2884 = vunpack.c.l.b16 %v2420
    %v2885 = vunpack.c.l.b16 %v2421
    %v2886 = vunpack.c.l.b16 %v2422
    %v2887 = vunpack.c.l.b16 %v2423
    %v2888 = vunpack.c.l.b16 %v2424
    %v2889 = vunpack.c.l.b16 %v2425
    %v2890 = vunpack.c.l.b16 %v2426
    %v2891 = vunpack.c.l.b16 %v2427
    %v2892 = vunpack.c.l.b16 %v2428
    %v2893 = vunpack.c.l.b16 %v2429
    %v2894 = vunpack.c.l.b16 %v2430
    %v2895 = vunpack.c.l.b16 %v2431
    %v2896 = vunpack.c.l.b16 %v2432
    %v2897 = vunpack.c.l.b16 %v2433
    %v2898 = vunpack.c.l.b16 %v2434
    %v2899 = vunpack.c.l.b16 %v2435
    %v2900 = vunpack.c.l.b16 %v2436
    %v2901 = vunpack.c.l.b16 %v2437
    %v2902 = vunpack.c.l.b16 %v2438
    %v2903 = vunpack.c.l.b16 %v2439
    %v2904 = vunpack.c.l.b16 %v2440
    %v2905 = vunpack.c.l.b16 %v2441
    %v2906 = vunpack.c.l.b16 %v2442
    %v2907 = vunpack.c.l.b16 %v2443
    %v2908 = vunpack.c.l.b16 %v2444
    %v2909 = vunpack.c.l.b16 %v2445
    %v2910 = vunpack.c.l.b16 %v2446
    %v2911 = vunpack.c.l.b16 %v2447
    %v2912 = vunpack.c.l.b16 %v2448
    %v2913 = vunpack.c.l.b16 %v2449
    %v2914 = vunpack.c.l.b16 %v2450
    %v2915 = vunpack.c.l.b16 %v2451
    %v2916 = vunpack.c.l.b16 %v2452
    %v2917 = vunpack.c.l.b16 %v2453
    %v2918 = vunpack.c.l.b16 %v2454
    %v2919 = vunpack.c.l.b16 %v2455
    %v2920 = vunpack.c.l.b16 %v2456
    %v2921 = vunpack.c.l.b16 %v2457
    %v2922 = vunpack.c.l.b16 %v2458
    %v2923 = vunpack.c.l.b16 %v2459
    %v2924 = vunpack.c.l.b16 %v2460
    %v2925 = vunpack.c.l.b16 %v2461
    %v2926 = vunpack.c.l.b16 %v2462
    %v2927 = vpack.c.b16 %v2864, %v2863
    %v2928 = vpack.c.b16 %v2866, %v2865
    %v2929 = vpack.c.b16 %v2868, %v2867
    %v2930 = vpack.c.b16 %v2870, %v2869
    %v2931 = vpack.c.b16 %v2872, %v2871
    %v2932 = vpack.c.b16 %v2874, %v2873
    %v2933 = vpack.c.b16 %v2876, %v2875
    %v2934 = vpack.c.b16 %v2878, %v2877
    %v2935 = vpack.c.b16 %v2880, %v2879
    %v2936 = vpack.c.b16 %v2882, %v2881
    %v2937 = vpack.c.b16 %v2884, %v2883
    %v2938 = vpack.c.b16 %v2886, %v2885
    %v2939 = vpack.c.b16 %v2888, %v2887
    %v2940 = vpack.c.b16 %v2890, %v2889
    %v2941 = vpack.c.b16 %v2892, %v2891
    %v2942 = vpack.c.b16 %v2894, %v2893
    %v2943 = vpack.c.b16 %v2896, %v2895
    %v2944 = vpack.c.b16 %v2898, %v2897
    %v2945 = vpack.c.b16 %v2900, %v2899
    %v2946 = vpack.c.b16 %v2902, %v2901
    %v2947 = vpack.c.b16 %v2904, %v2903
    %v2948 = vpack.c.b16 %v2906, %v2905
    %v2949 = vpack.c.b16 %v2908, %v2907
    %v2950 = vpack.c.b16 %v2910, %v2909
    %v2951 = vpack.c.b16 %v2912, %v2911
    %v2952 = vpack.c.b16 %v2914, %v2913
    %v2953 = vpack.c.b16 %v2916, %v2915
    %v2954 = vpack.c.b16 %v2918, %v2917
    %v2955 = vpack.c.b16 %v2920, %v2919
    %v2956 = vpack.c.b16 %v2922, %v2921
    %v2957 = vpack.c.b16 %v2924, %v2923
    %v2958 = vpack.c.b16 %v2926, %v2925
    %2991 = vmatprep.subr.bf16.mxu0 0
    %2992 = vmatpush1.bf16.msra.mxu0 %v2927
    %2993 = vmatprep.subr.bf16.mxu0 0
    %2994 = vmatpush1.bf16.msra.mxu0 %v2928
    %2995 = vmatprep.subr.bf16.mxu0 0
    %2996 = vmatpush1.bf16.msra.mxu0 %v2929
    %2997 = vmatprep.subr.bf16.mxu0 0
    %2998 = vmatpush1.bf16.msra.mxu0 %v2930
    %2999 = vmatprep.subr.bf16.mxu0 0
    %3000 = vmatpush1.bf16.msra.mxu0 %v2931
    %3001 = vmatprep.subr.bf16.mxu0 0
    %3002 = vmatpush1.bf16.msra.mxu0 %v2932
    %3003 = vmatprep.subr.bf16.mxu0 0
    %3004 = vmatpush1.bf16.msra.mxu0 %v2933
    %3005 = vmatprep.subr.bf16.mxu0 0
    %3006 = vmatpush1.bf16.msra.mxu0 %v2934
    %3007 = vmatprep.subr.bf16.mxu0 0
    %3008 = vmatpush1.bf16.msra.mxu0 %v2935
    %3009 = vmatprep.subr.bf16.mxu0 0
    %3010 = vmatpush1.bf16.msra.mxu0 %v2936
    %3011 = vmatprep.subr.bf16.mxu0 0
    %3012 = vmatpush1.bf16.msra.mxu0 %v2937
    %3013 = vmatprep.subr.bf16.mxu0 0
    %3014 = vmatpush1.bf16.msra.mxu0 %v2938
    %3015 = vmatprep.subr.bf16.mxu0 0
    %3016 = vmatpush1.bf16.msra.mxu0 %v2939
    %3017 = vmatprep.subr.bf16.mxu0 0
    %3018 = vmatpush1.bf16.msra.mxu0 %v2940
    %3019 = vmatprep.subr.bf16.mxu0 0
    %3020 = vmatpush1.bf16.msra.mxu0 %v2941
    %3021 = vmatprep.subr.bf16.mxu0 0
    %3022 = vmatpush1.bf16.msra.mxu0 %v2942
    %3023 = vmatprep.mubr.bf16.mxu0 %v1420
    %3024 = vmatmul.mubr.bf16.gmra.mrb[0].mxu0 %v1419
    %v3025 = vpop.f32.mrb[0].mxu0
    %v3026 = vadd.f32 %v2794, %v3025
    %v3027 = vpop.f32.mrb[0].mxu0
    %v3028 = vpop.f32.mrb[0].mxu0
    %v3029 = vpop.f32.mrb[0].mxu0
    %3030 = vdwg.mxu0
    %3031 = vmatprep.subr.bf16.mxu0 0
    %3032 = vmatpush1.bf16.msra.mxu0 %v2943
    %3033 = vmatprep.subr.bf16.mxu0 0
    %3034 = vmatpush1.bf16.msra.mxu0 %v2944
    %3035 = vmatprep.subr.bf16.mxu0 0
    %3036 = vmatpush1.bf16.msra.mxu0 %v2945
    %3037 = vmatprep.subr.bf16.mxu0 0
    %3038 = vmatpush1.bf16.msra.mxu0 %v2946
    %3039 = vmatprep.subr.bf16.mxu0 0
    %3040 = vmatpush1.bf16.msra.mxu0 %v2947
    %3041 = vmatprep.subr.bf16.mxu0 0
    %3042 = vmatpush1.bf16.msra.mxu0 %v2948
    %3043 = vmatprep.subr.bf16.mxu0 0
    %3044 = vmatpush1.bf16.msra.mxu0 %v2949
    %3045 = vmatprep.subr.bf16.mxu0 0
    %3046 = vmatpush1.bf16.msra.mxu0 %v2950
    %3047 = vmatprep.subr.bf16.mxu0 0
    %3048 = vmatpush1.bf16.msra.mxu0 %v2951
    %3049 = vmatprep.subr.bf16.mxu0 0
    %3050 = vmatpush1.bf16.msra.mxu0 %v2952
    %3051 = vmatprep.subr.bf16.mxu0 0
    %3052 = vmatpush1.bf16.msra.mxu0 %v2953
    %3053 = vmatprep.subr.bf16.mxu0 0
    %3054 = vmatpush1.bf16.msra.mxu0 %v2954
    %3055 = vmatprep.subr.bf16.mxu0 0
    %3056 = vmatpush1.bf16.msra.mxu0 %v2955
    %3057 = vmatprep.subr.bf16.mxu0 0
    %3058 = vmatpush1.bf16.msra.mxu0 %v2956
    %3059 = vmatprep.subr.bf16.mxu0 0
    %3060 = vmatpush1.bf16.msra.mxu0 %v2957
    %3061 = vmatprep.subr.bf16.mxu0 0
    %3062 = vmatpush1.bf16.msra.mxu0 %v2958
    %3063 = vmatprep.mubr.bf16.mxu0 %v1422
    %3064 = vmatmul.mubr.bf16.gmra.mrb[0].mxu0 %v1421
    %v3065 = vpop.f32.mrb[0].mxu0
    %v3066 = vadd.f32 %v3026, %v3065
    %v3067 = vpop.f32.mrb[0].mxu0
    %v3068 = vpop.f32.mrb[0].mxu0
    %v3069 = vpop.f32.mrb[0].mxu0
    %3070 = vdwg.mxu0
    %v3071 = vlaneseq
    %v3072 = vshrl.u32 %v3071, 7
    %v3073 = vsub.s32 2, %v3072
    %v3074 = vrot.slane %v85, %v3073
    %v3075 = vadd.f32 %v3066, %v3074
    %3077 = vrot.lane.b32.xlu0 %v3075, 127
    %v3078 = vpop.permute.xlu0 %3077
    %vm3080 = vcmask 31744
    %v3081 = vsel %vm3080, %v3078, 0.0
    %3082 = vadd.xlane.f32.xlu0 %v3081
    %v3083 = vpop.xlane.xlu0 %3082
    %v3084 = vmul.f32 %v3083, 0.25
    %3085 = vset.pattern.permute.xlu0 0
    %3086 = vperm.xlu0 %3085, %v3075
    %v3087 = vpop.permute.xlu0 %3086
    %v3089 = vadd.f32 %v3087, %v3075
    %v3090 = vsub.f32 %v3089, %v3084
    %3092 = vrot.lane.b32.xlu0 %v3090, 127
    %v3093 = vpop.permute.xlu0 %3092
    %3095 = vst.msk [vmem:[%s5] sm:$0xff] %vm3080, %v3093
    // Predicated region
    $region42: #{tpu_custom_call.1} parent=1 // pred_check
      _
    $region43: #{tpu_custom_call.1} parent=1 // pred_check_branch
      %3097 = sbr.rel (0) target = $region45
    $region44: #{tpu_custom_call.1} parent=1 // pred_region
      _
    $region45: #{tpu_custom_call.1} parent=1 // pred_fallthru
      _
    // Predicated region
    $region46: #{tpu_custom_call.1} parent=1 // pred_check
      _
    $region47: #{tpu_custom_call.1} parent=1 // pred_check_branch
      %3099 = sbr.rel (0) target = $region49
    $region48: #{tpu_custom_call.1} parent=1 // pred_region
      _
    $region49: #{tpu_custom_call.1} parent=1 // pred_fallthru
      _
    %3100 = vsyncpa [#allocation3], 1
    %3101 = vsyncpa [#allocation5], 1
    %3102 = vsyncpa [#allocation8], 1

</llo_original>
